<compile_context>
chip_gen: v7x
topology: tpu7x:2x2x1
jax: 0.10.0
libtpu: 0.0.40
codegen_flags: <defaults>
</compile_context>

<pallas_src>
import functools

import jax
import jax.numpy as jnp
from jax import lax
from jax.experimental import pallas as pl
from jax.experimental.pallas import tpu as pltpu

EPS = 1e-5          # InstanceNorm2d default eps
NEG_SLOPE = 0.01    # LeakyReLU default negative_slope
KH = KW = 3         # this implementation covers the 3x3 convs used by the config
PAD = (KH - 1) // 2
LANES = 128


def _round_up(x, m):
    return (x + m - 1) // m * m


# ---------------------------------------------------------------------------
# In-kernel epilogue: conv bias + InstanceNorm (affine) + LeakyReLU, all in f32.
# acc   : (Cout, Q) f32 conv output in "extended" layout (junk columns present)
# params: (Cout, 3) f32, columns = [conv bias, gamma, beta]
# mask  : (1, Q)   f32, 1.0 on valid output columns, 0.0 on junk columns
# ---------------------------------------------------------------------------
def _norm_act(acc, params, mask, inv_n, last):
    bias = params[:, 0:1]
    gamma = params[:, 1:2]
    beta = params[:, 2:3]
    acc = acc + bias
    mean = jnp.sum(acc * mask, axis=1, keepdims=True) * inv_n
    c = acc - mean
    d = c * mask
    var = jnp.sum(d * d, axis=1, keepdims=True) * inv_n
    scale = gamma * lax.rsqrt(var + EPS)          # per-channel (Cout,1): cheap
    y = c * scale + beta
    y = jnp.maximum(y, NEG_SLOPE * y)             # LeakyReLU (slope in (0,1))
    if last:
        # junk columns are sliced away in the wrapper; skip the final mask mul
        return y
    # zero the junk columns: they double as the zero padding of the next conv
    return y * mask


# ---------------------------------------------------------------------------
# One fused stage kernel (all n_conv ConvDropoutNormReLU layers of the stage).
# Each 3x3 conv = 9 tap-matmuls straight from bf16 VMEM slices (no im2col buffer).
# ---------------------------------------------------------------------------
def _make_stage_kernel(*, cin, feat, stride, hout, wout, wph, margin, n_conv):
    Q = hout * wph
    inv_n = 1.0 / float(hout * wout)
    sh = sw = stride
    tail = wph + 1                      # trailing zero margin of the hand buffer

    def kernel(*refs):
        x_ref = refs[0]                              # (nph*cin, L1) bf16
        wp_refs = refs[1:1 + 2 * n_conv]             # per layer: (9*feat, cin_l) bf16, (feat, 3) f32
        mask_ref = refs[1 + 2 * n_conv]              # (1, Q) f32
        o_ref = refs[2 + 2 * n_conv]                 # (feat, Q) bf16
        scratch = refs[3 + 2 * n_conv:]
        hand_ref = scratch[0] if n_conv > 1 else None

        mask = mask_ref[...]

        if n_conv > 1:
            # Zero only the margins of the padded intermediate buffer.  The
            # [margin, margin+Q) window is fully rewritten every layer and its
            # junk columns are re-zeroed by y*mask, so no full-buffer memset.
            hand_ref[:, pl.ds(0, margin)] = jnp.zeros((feat, margin), jnp.bfloat16)
            hand_ref[:, pl.ds(margin + Q, tail)] = jnp.zeros((feat, tail), jnp.bfloat16)

        # -------- layer 0: (possibly strided) conv from the polyphase input --------
        w0 = wp_refs[0]
        acc = None
        for i in range(KH):
            for j in range(KW):
                t = i * KW + j
                ph = (i % sh) * sw + (j % sw)
                off = (i // sh) * wph + (j // sw)
                p = jnp.dot(w0[pl.ds(t * feat, feat), :],
                            x_ref[pl.ds(ph * cin, cin), pl.ds(off, Q)],
                            preferred_element_type=jnp.float32)
                acc = p if acc is None else acc + p
        y = _norm_act(acc, wp_refs[1][...], mask, inv_n, last=(n_conv == 1))

        # -------- layers 1..n-1: stride-1 convs; intermediate stays in VMEM (bf16) --------
        for layer in range(1, n_conv):
            # Lane-aligned embed (margin % 128 == 0, Q % 128 == 0): the leading zero
            # margin gives the top/left conv padding, the junk columns + trailing
            # zeros give right/bottom padding.
            hand_ref[:, pl.ds(margin, Q)] = y.astype(jnp.bfloat16)
            wl = wp_refs[2 * layer]
            acc = None
            for i in range(KH):
                for j in range(KW):
                    t = i * KW + j
                    off = margin - (wph + 1) + i * wph + j
                    p = jnp.dot(wl[pl.ds(t * feat, feat), :],
                                hand_ref[:, pl.ds(off, Q)],
                                preferred_element_type=jnp.float32)
                    acc = p if acc is None else acc + p
            y = _norm_act(acc, wp_refs[2 * layer + 1][...], mask, inv_n,
                          last=(layer == n_conv - 1))

        o_ref[...] = y.astype(o_ref.dtype)

    return kernel


# ---------------------------------------------------------------------------
# One StackedConvBlocks stage: glue (pad + polyphase split + weight packing)
# followed by a single pallas_call.
# ---------------------------------------------------------------------------
@functools.partial(jax.jit, static_argnames=("stride",))
def stage_forward(x_nchw, layers, *, stride):
    B, cin, H, W = x_nchw.shape
    feat = layers[0]["w"].shape[0]
    n_conv = len(layers)
    sh = sw = stride
    T = KH * KW
    nph = sh * sw

    hout = (H + 2 * PAD - KH) // sh + 1
    wout = (W + 2 * PAD - KW) // sw + 1

    # Extended row width.  Pick wph so Q = hout*wph is a multiple of 128 lanes whenever
    # it costs no extra vregs (masked partial stores occupy a full vreg slot anyway);
    # otherwise fall back to the minimum wout + 2.
    wph_min = wout + (KW - 1)
    q_padded = _round_up(hout * wph_min, LANES)
    wph = q_padded // hout if q_padded % hout == 0 else wph_min
    Q = hout * wph

    hph = hout + (KH - 1) // sh + 1     # phase rows (+1 spare zero row for flat slices)
    L1 = hph * wph
    margin = _round_up(wph + 1, LANES)  # lane-aligned embed offset in the hand buffer
    l_hand = margin + Q + wph + 1

    # Pad the input channel count to the 8-sublane granule only for strided stages
    # (there the polyphase sublane slices start at ph*cin); stride-1 stages keep the
    # raw channel count to avoid extra HBM traffic.
    cin_k = cin if nph == 1 else _round_up(cin, 8)

    pad_b = sh * hph - H - PAD
    pad_r = sw * wph - W - PAD
    assert pad_b >= 0 and pad_r >= 0

    # ---- glue: pad + polyphase split + flatten, all in bf16 (no 9x im2col in HBM) ----
    # TODO(synk): fold this pad/polyphase copy into the kernel to avoid one extra
    #             HBM read+write of the image per stage.
    xp = jnp.pad(x_nchw.astype(jnp.bfloat16),
                 ((0, 0), (0, cin_k - cin), (PAD, pad_b), (PAD, pad_r)))
    if nph == 1:
        xflat = xp.reshape(B, cin_k, L1)
    else:
        phases = [xp[:, :, pi::sh, pj::sw] for pi in range(sh) for pj in range(sw)]
        xflat = jnp.stack(phases, axis=1).reshape(B, nph * cin_k, L1)

    # ---- glue: weights packed per-tap as (9*F, Cin) bf16; [bias,gamma,beta] (F,3) f32 ----
    ops = []
    for li, lyr in enumerate(layers):
        w = lyr["w"]                                       # (F, Cin_l, KH, KW) OIHW
        if li == 0 and cin_k != cin:
            w = jnp.pad(w, ((0, 0), (0, cin_k - cin), (0, 0), (0, 0)))
        cin_l = w.shape[1]
        ops.append(jnp.transpose(w, (2, 3, 0, 1)).reshape(T * feat, cin_l)
                   .astype(jnp.bfloat16))
        ops.append(jnp.stack([lyr["b"], lyr["gamma"], lyr["beta"]], axis=1)
                   .astype(jnp.float32))

    # valid-column mask of the extended layout
    mask = (jnp.arange(Q, dtype=jnp.int32) % wph < wout).astype(jnp.float32).reshape(1, Q)

    kernel = _make_stage_kernel(cin=cin_k, feat=feat, stride=stride, hout=hout,
                                wout=wout, wph=wph, margin=margin, n_conv=n_conv)

    in_specs = [pl.BlockSpec((None, nph * cin_k, L1), lambda b: (b, 0, 0))]
    for a in ops:
        in_specs.append(pl.BlockSpec(a.shape, lambda b: (0, 0)))
    in_specs.append(pl.BlockSpec((1, Q), lambda b: (0, 0)))

    scratch_shapes = []
    if n_conv > 1:
        scratch_shapes.append(pltpu.VMEM((feat, l_hand), jnp.bfloat16))

    # ---- explicit VMEM budget (double-buffered blocks + scratch) with headroom ----
    def _padded_bytes(shape, dtype):
        rows = _round_up(shape[-2], 8) if len(shape) >= 2 else 1
        cols = _round_up(shape[-1], LANES)
        lead = 1
        for s in shape[:-2]:
            lead *= s
        return lead * rows * cols * jnp.dtype(dtype).itemsize

    est = 2 * _padded_bytes((nph * cin_k, L1), jnp.bfloat16)
    est += 2 * _padded_bytes((feat, Q), jnp.bfloat16)
    est += 2 * _padded_bytes((1, Q), jnp.float32)
    for a in ops:
        est += 2 * _padded_bytes(a.shape, a.dtype)
    if n_conv > 1:
        est += _padded_bytes((feat, l_hand), jnp.bfloat16)
    vmem_limit = int(min(max(2 * est + (2 << 20), 16 << 20), 64 << 20))

    out = pl.pallas_call(
        kernel,
        out_shape=jax.ShapeDtypeStruct((B, feat, Q), jnp.bfloat16),
        grid=(B,),
        in_specs=in_specs,
        out_specs=pl.BlockSpec((None, feat, Q), lambda b: (b, 0, 0)),
        scratch_shapes=scratch_shapes,
        compiler_params=pltpu.CompilerParams(
            dimension_semantics=("parallel",),
            vmem_limit_bytes=vmem_limit),
    )(xflat, *ops, mask)

    # drop the junk columns of the extended layout -> NCHW output, no transpose needed
    return out.reshape(B, feat, hout, wph)[:, :, :, :wout]


# ---------------------------------------------------------------------------
# Parameter construction (deterministic, in-script). PyTorch OIHW weight layout.
# ---------------------------------------------------------------------------
def init_encoder_params(key, input_channels, features_per_stage, kernel_sizes,
                        strides, n_conv_per_stage):
    assert all(k == 3 for k in kernel_sizes)   # this implementation: 3x3 convs
    stages = []
    cin = input_channels
    for feat, nconv in zip(features_per_stage, n_conv_per_stage):
        layers = []
        for _ in range(nconv):
            key, k1, k2, k3, k4 = jax.random.split(key, 5)
            fan_in = cin * KH * KW
            w = jax.random.normal(k1, (feat, cin, KH, KW), jnp.float32) * (fan_in ** -0.5)
            b = 0.01 * jax.random.normal(k2, (feat,), jnp.float32)
            gamma = 1.0 + 0.1 * jax.random.normal(k3, (feat,), jnp.float32)
            beta = 0.1 * jax.random.normal(k4, (feat,), jnp.float32)
            layers.append(dict(w=w, b=b, gamma=gamma, beta=beta))
            cin = feat
        stages.append(tuple(layers))
    return stages


# ---------------------------------------------------------------------------
# PlainConvEncoder.forward equivalent (pool='conv', dropout=None, nonlin_first=False).
# ---------------------------------------------------------------------------
def plain_conv_encoder_forward(x_nchw, stage_params, strides, return_skips=False):
    skips = []
    x = x_nchw
    for layers, st in zip(stage_params, strides):
        x = stage_forward(x, layers, stride=int(st))
        skips.append(x)
    return skips if return_skips else skips[-1]


# ---------------------------------------------------------------------------
# Pure-JAX reference for correctness checking (true f32 semantics).
# ---------------------------------------------------------------------------
def _ref_layer(x, w, b, gamma, beta, stride):
    y = lax.conv_general_dilated(
        x, w, window_strides=(stride, stride),
        padding=((PAD, PAD), (PAD, PAD)),
        dimension_numbers=("NCHW", "OIHW", "NCHW"))
    y = y + b[None, :, None, None]
    mean = jnp.mean(y, axis=(2, 3), keepdims=True)
    var = jnp.mean(jnp.square(y - mean), axis=(2, 3), keepdims=True)
    y = (y - mean) * lax.rsqrt(var + EPS)
    y = y * gamma[None, :, None, None] + beta[None, :, None, None]
    return jnp.where(y >= 0.0, y, NEG_SLOPE * y)


def _ref_forward(x, stage_params, strides):
    for layers, st in zip(stage_params, strides):
        for idx, lyr in enumerate(layers):
            s = int(st) if idx == 0 else 1
            x = _ref_layer(x, lyr["w"], lyr["b"], lyr["gamma"], lyr["beta"], s)
    return x


if __name__ == "__main__":
    # Encoder config (small, consistent with the PyTorch module's __init__).
    input_channels = 4
    n_stages = 2
    features_per_stage = [8, 16]
    kernel_sizes = [3, 3]
    strides = [1, 2]
    n_conv_per_stage = [2, 2]

    key = jax.random.PRNGKey(0)
    key, xkey, pkey = jax.random.split(key, 3)
    x = jax.random.normal(xkey, (2, input_channels, 16, 16), jnp.float32)  # NCHW

    params = init_encoder_params(pkey, input_channels, features_per_stage,
                                 kernel_sizes, strides, n_conv_per_stage)

    out = plain_conv_encoder_forward(x, params, strides, return_skips=False)
    out = jax.block_until_ready(out)

    ref = jax.block_until_ready(_ref_forward(x, params, strides))
    assert out.shape == (2, features_per_stage[-1], 8, 8), out.shape
    # bf16 matmul operands + bf16 inter-stage activations, f32 accumulation/epilogue
    err = float(jnp.max(jnp.abs(out.astype(jnp.float32) - ref)))
    assert err < 1e-1, err

    # TODO(synk): pool='max'/'avg' pre-pooling and dropout branches of the module are
    # not exercised by this config and are not implemented.
    print("KERNEL_OK")
</pallas_src>

<mosaic_0001>
module attributes {stable_mosaic.version = 11 : i64} {
  func.func @kernel(%arg0: i32, %arg1: memref<1x4x456xbf16, #tpu.memory_space<vmem>>, %arg2: memref<72x4xbf16, #tpu.memory_space<vmem>>, %arg3: memref<8x3xf32, #tpu.memory_space<vmem>>, %arg4: memref<72x8xbf16, #tpu.memory_space<vmem>>, %arg5: memref<8x3xf32, #tpu.memory_space<vmem>>, %arg6: memref<1x384xf32, #tpu.memory_space<vmem>>, %arg7: memref<1x8x384xbf16, #tpu.memory_space<vmem>>, %arg8: memref<8x537xbf16, #tpu.memory_space<vmem>>) attributes {dimension_semantics = [#tpu.dimension_semantics<parallel>], iteration_bounds = array<i64: 2>, scalar_prefetch = 0 : i64, scratch_operands = 1 : i64, tpu.core_type = #tpu.core_type<tc>, window_params = [{transform_indices = @transform_0, window_bounds = array<i64: 1, 4, 456>}, {pipeline_mode = #tpu.pipeline_mode<synchronous>, transform_indices = @transform_1, window_bounds = array<i64: 72, 4>}, {pipeline_mode = #tpu.pipeline_mode<synchronous>, transform_indices = @transform_2, window_bounds = array<i64: 8, 3>}, {pipeline_mode = #tpu.pipeline_mode<synchronous>, transform_indices = @transform_3, window_bounds = array<i64: 72, 8>}, {pipeline_mode = #tpu.pipeline_mode<synchronous>, transform_indices = @transform_4, window_bounds = array<i64: 8, 3>}, {pipeline_mode = #tpu.pipeline_mode<synchronous>, transform_indices = @transform_5, window_bounds = array<i64: 1, 384>}, {transform_indices = @transform_6, window_bounds = array<i64: 1, 8, 384>}]} {
    %c0 = arith.constant 0 : index
    %c0_0 = arith.constant 0 : index
    %0 = vector.load %arg6[%c0, %c0_0] : memref<1x384xf32, #tpu.memory_space<vmem>>, vector<1x384xf32>
    %cst = arith.constant 0.000000e+00 : bf16
    %1 = vector.broadcast %cst : bf16 to vector<8x128xbf16>
    %c0_1 = arith.constant 0 : index
    %c0_2 = arith.constant 0 : index
    %2 = vector.load %arg8[%c0_1, %c0_2] : memref<8x537xbf16, #tpu.memory_space<vmem>>, vector<8x128xbf16>
    tpu.vector_store %arg8[%c0_1, %c0_2], %1 {strides = array<i32>} : memref<8x537xbf16, #tpu.memory_space<vmem>>, vector<8x128xbf16>,
    %cst_3 = arith.constant 0.000000e+00 : bf16
    %3 = vector.broadcast %cst_3 : bf16 to vector<8x25xbf16>
    %c0_4 = arith.constant 0 : index
    %c512 = arith.constant 512 : index
    %4 = vector.load %arg8[%c0_4, %c512] : memref<8x537xbf16, #tpu.memory_space<vmem>>, vector<8x25xbf16>
    tpu.vector_store %arg8[%c0_4, %c512], %3 {strides = array<i32>} : memref<8x537xbf16, #tpu.memory_space<vmem>>, vector<8x25xbf16>,
    %c0_5 = arith.constant 0 : index
    %c0_6 = arith.constant 0 : index
    %5 = vector.load %arg2[%c0_5, %c0_6] : memref<72x4xbf16, #tpu.memory_space<vmem>>, vector<8x4xbf16>
    %c0_7 = arith.constant 0 : index
    %c0_8 = arith.constant 0 : index
    %c0_9 = arith.constant 0 : index
    %6 = vector.load %arg1[%c0_7, %c0_8, %c0_9] : memref<1x4x456xbf16, #tpu.memory_space<vmem>>, vector<1x4x384xbf16>
    %7 = vector.shape_cast %6 : vector<1x4x384xbf16> to vector<4x384xbf16>
    %cst_10 = arith.constant dense<0.000000e+00> : vector<8x384xf32>
    %8 = tpu.matmul %5, %7, %cst_10 {dimension_numbers = #tpu.dot_dimension_numbers<[1], [0], [0], [1], [0, 0, 1, 1], [], []>} : vector<8x4xbf16>, vector<4x384xbf16>, vector<8x384xf32> -> vector<8x384xf32>
    %c8 = arith.constant 8 : index
    %c0_11 = arith.constant 0 : index
    %9 = vector.load %arg2[%c8, %c0_11] : memref<72x4xbf16, #tpu.memory_space<vmem>>, vector<8x4xbf16>
    %c0_12 = arith.constant 0 : index
    %c0_13 = arith.constant 0 : index
    %c1 = arith.constant 1 : index
    %10 = vector.load %arg1[%c0_12, %c0_13, %c1] : memref<1x4x456xbf16, #tpu.memory_space<vmem>>, vector<1x4x384xbf16>
    %11 = vector.shape_cast %10 : vector<1x4x384xbf16> to vector<4x384xbf16>
    %cst_14 = arith.constant dense<0.000000e+00> : vector<8x384xf32>
    %12 = tpu.matmul %9, %11, %cst_14 {dimension_numbers = #tpu.dot_dimension_numbers<[1], [0], [0], [1], [0, 0, 1, 1], [], []>} : vector<8x4xbf16>, vector<4x384xbf16>, vector<8x384xf32> -> vector<8x384xf32>
    %13 = arith.addf %8, %12 : vector<8x384xf32>
    %c16 = arith.constant 16 : index
    %c0_15 = arith.constant 0 : index
    %14 = vector.load %arg2[%c16, %c0_15] : memref<72x4xbf16, #tpu.memory_space<vmem>>, vector<8x4xbf16>
    %c0_16 = arith.constant 0 : index
    %c0_17 = arith.constant 0 : index
    %c2 = arith.constant 2 : index
    %15 = vector.load %arg1[%c0_16, %c0_17, %c2] : memref<1x4x456xbf16, #tpu.memory_space<vmem>>, vector<1x4x384xbf16>
    %16 = vector.shape_cast %15 : vector<1x4x384xbf16> to vector<4x384xbf16>
    %cst_18 = arith.constant dense<0.000000e+00> : vector<8x384xf32>
    %17 = tpu.matmul %14, %16, %cst_18 {dimension_numbers = #tpu.dot_dimension_numbers<[1], [0], [0], [1], [0, 0, 1, 1], [], []>} : vector<8x4xbf16>, vector<4x384xbf16>, vector<8x384xf32> -> vector<8x384xf32>
    %18 = arith.addf %13, %17 : vector<8x384xf32>
    %c24 = arith.constant 24 : index
    %c0_19 = arith.constant 0 : index
    %19 = vector.load %arg2[%c24, %c0_19] : memref<72x4xbf16, #tpu.memory_space<vmem>>, vector<8x4xbf16>
    %c0_20 = arith.constant 0 : index
    %c0_21 = arith.constant 0 : index
    %c24_22 = arith.constant 24 : index
    %20 = vector.load %arg1[%c0_20, %c0_21, %c24_22] : memref<1x4x456xbf16, #tpu.memory_space<vmem>>, vector<1x4x384xbf16>
    %21 = vector.shape_cast %20 : vector<1x4x384xbf16> to vector<4x384xbf16>
    %cst_23 = arith.constant dense<0.000000e+00> : vector<8x384xf32>
    %22 = tpu.matmul %19, %21, %cst_23 {dimension_numbers = #tpu.dot_dimension_numbers<[1], [0], [0], [1], [0, 0, 1, 1], [], []>} : vector<8x4xbf16>, vector<4x384xbf16>, vector<8x384xf32> -> vector<8x384xf32>
    %23 = arith.addf %18, %22 : vector<8x384xf32>
    %c32 = arith.constant 32 : index
    %c0_24 = arith.constant 0 : index
    %24 = vector.load %arg2[%c32, %c0_24] : memref<72x4xbf16, #tpu.memory_space<vmem>>, vector<8x4xbf16>
    %c0_25 = arith.constant 0 : index
    %c0_26 = arith.constant 0 : index
    %c25 = arith.constant 25 : index
    %25 = vector.load %arg1[%c0_25, %c0_26, %c25] : memref<1x4x456xbf16, #tpu.memory_space<vmem>>, vector<1x4x384xbf16>
    %26 = vector.shape_cast %25 : vector<1x4x384xbf16> to vector<4x384xbf16>
    %cst_27 = arith.constant dense<0.000000e+00> : vector<8x384xf32>
    %27 = tpu.matmul %24, %26, %cst_27 {dimension_numbers = #tpu.dot_dimension_numbers<[1], [0], [0], [1], [0, 0, 1, 1], [], []>} : vector<8x4xbf16>, vector<4x384xbf16>, vector<8x384xf32> -> vector<8x384xf32>
    %28 = arith.addf %23, %27 : vector<8x384xf32>
    %c40 = arith.constant 40 : index
    %c0_28 = arith.constant 0 : index
    %29 = vector.load %arg2[%c40, %c0_28] : memref<72x4xbf16, #tpu.memory_space<vmem>>, vector<8x4xbf16>
    %c0_29 = arith.constant 0 : index
    %c0_30 = arith.constant 0 : index
    %c26 = arith.constant 26 : index
    %30 = vector.load %arg1[%c0_29, %c0_30, %c26] : memref<1x4x456xbf16, #tpu.memory_space<vmem>>, vector<1x4x384xbf16>
    %31 = vector.shape_cast %30 : vector<1x4x384xbf16> to vector<4x384xbf16>
    %cst_31 = arith.constant dense<0.000000e+00> : vector<8x384xf32>
    %32 = tpu.matmul %29, %31, %cst_31 {dimension_numbers = #tpu.dot_dimension_numbers<[1], [0], [0], [1], [0, 0, 1, 1], [], []>} : vector<8x4xbf16>, vector<4x384xbf16>, vector<8x384xf32> -> vector<8x384xf32>
    %33 = arith.addf %28, %32 : vector<8x384xf32>
    %c48 = arith.constant 48 : index
    %c0_32 = arith.constant 0 : index
    %34 = vector.load %arg2[%c48, %c0_32] : memref<72x4xbf16, #tpu.memory_space<vmem>>, vector<8x4xbf16>
    %c0_33 = arith.constant 0 : index
    %c0_34 = arith.constant 0 : index
    %c48_35 = arith.constant 48 : index
    %35 = vector.load %arg1[%c0_33, %c0_34, %c48_35] : memref<1x4x456xbf16, #tpu.memory_space<vmem>>, vector<1x4x384xbf16>
    %36 = vector.shape_cast %35 : vector<1x4x384xbf16> to vector<4x384xbf16>
    %cst_36 = arith.constant dense<0.000000e+00> : vector<8x384xf32>
    %37 = tpu.matmul %34, %36, %cst_36 {dimension_numbers = #tpu.dot_dimension_numbers<[1], [0], [0], [1], [0, 0, 1, 1], [], []>} : vector<8x4xbf16>, vector<4x384xbf16>, vector<8x384xf32> -> vector<8x384xf32>
    %38 = arith.addf %33, %37 : vector<8x384xf32>
    %c56 = arith.constant 56 : index
    %c0_37 = arith.constant 0 : index
    %39 = vector.load %arg2[%c56, %c0_37] : memref<72x4xbf16, #tpu.memory_space<vmem>>, vector<8x4xbf16>
    %c0_38 = arith.constant 0 : index
    %c0_39 = arith.constant 0 : index
    %c49 = arith.constant 49 : index
    %40 = vector.load %arg1[%c0_38, %c0_39, %c49] : memref<1x4x456xbf16, #tpu.memory_space<vmem>>, vector<1x4x384xbf16>
    %41 = vector.shape_cast %40 : vector<1x4x384xbf16> to vector<4x384xbf16>
    %cst_40 = arith.constant dense<0.000000e+00> : vector<8x384xf32>
    %42 = tpu.matmul %39, %41, %cst_40 {dimension_numbers = #tpu.dot_dimension_numbers<[1], [0], [0], [1], [0, 0, 1, 1], [], []>} : vector<8x4xbf16>, vector<4x384xbf16>, vector<8x384xf32> -> vector<8x384xf32>
    %43 = arith.addf %38, %42 : vector<8x384xf32>
    %c64 = arith.constant 64 : index
    %c0_41 = arith.constant 0 : index
    %44 = vector.load %arg2[%c64, %c0_41] : memref<72x4xbf16, #tpu.memory_space<vmem>>, vector<8x4xbf16>
    %c0_42 = arith.constant 0 : index
    %c0_43 = arith.constant 0 : index
    %c50 = arith.constant 50 : index
    %45 = vector.load %arg1[%c0_42, %c0_43, %c50] : memref<1x4x456xbf16, #tpu.memory_space<vmem>>, vector<1x4x384xbf16>
    %46 = vector.shape_cast %45 : vector<1x4x384xbf16> to vector<4x384xbf16>
    %cst_44 = arith.constant dense<0.000000e+00> : vector<8x384xf32>
    %47 = tpu.matmul %44, %46, %cst_44 {dimension_numbers = #tpu.dot_dimension_numbers<[1], [0], [0], [1], [0, 0, 1, 1], [], []>} : vector<8x4xbf16>, vector<4x384xbf16>, vector<8x384xf32> -> vector<8x384xf32>
    %48 = arith.addf %43, %47 : vector<8x384xf32>
    %c0_45 = arith.constant 0 : index
    %c0_46 = arith.constant 0 : index
    %49 = vector.load %arg3[%c0_45, %c0_46] : memref<8x3xf32, #tpu.memory_space<vmem>>, vector<8x3xf32>
    %50 = vector.extract_strided_slice %49 {offsets = [0, 0], sizes = [8, 1], strides = [1, 1]} : vector<8x3xf32> to vector<8x1xf32>
    %51 = vector.extract_strided_slice %49 {offsets = [0, 1], sizes = [8, 1], strides = [1, 1]} : vector<8x3xf32> to vector<8x1xf32>
    %52 = vector.extract_strided_slice %49 {offsets = [0, 2], sizes = [8, 1], strides = [1, 1]} : vector<8x3xf32> to vector<8x1xf32>
    %53 = vector.broadcast %50 : vector<8x1xf32> to vector<8x384xf32>
    %54 = arith.addf %48, %53 : vector<8x384xf32>
    %55 = vector.broadcast %0 : vector<1x384xf32> to vector<8x384xf32>
    %56 = arith.mulf %54, %55 : vector<8x384xf32>
    %cst_47 = arith.constant dense<0.000000e+00> : vector<8xf32>
    %57 = vector.multi_reduction <add>, %56, %cst_47 [1] : vector<8x384xf32> to vector<8xf32>
    %58 = vector.shape_cast %57 : vector<8xf32> to vector<8x1xf32>
    %cst_48 = arith.constant 3.906250e-03 : f32
    %59 = vector.broadcast %cst_48 : f32 to vector<8x1xf32>
    %60 = arith.mulf %58, %59 : vector<8x1xf32>
    %61 = vector.broadcast %60 : vector<8x1xf32> to vector<8x384xf32>
    %62 = arith.subf %54, %61 : vector<8x384xf32>
    %63 = vector.broadcast %0 : vector<1x384xf32> to vector<8x384xf32>
    %64 = arith.mulf %62, %63 : vector<8x384xf32>
    %65 = arith.mulf %64, %64 : vector<8x384xf32>
    %cst_49 = arith.constant dense<0.000000e+00> : vector<8xf32>
    %66 = vector.multi_reduction <add>, %65, %cst_49 [1] : vector<8x384xf32> to vector<8xf32>
    %67 = vector.shape_cast %66 : vector<8xf32> to vector<8x1xf32>
    %cst_50 = arith.constant 3.906250e-03 : f32
    %68 = vector.broadcast %cst_50 : f32 to vector<8x1xf32>
    %69 = arith.mulf %67, %68 : vector<8x1xf32>
    %cst_51 = arith.constant 9.99999974E-6 : f32
    %70 = vector.broadcast %cst_51 : f32 to vector<8x1xf32>
    %71 = arith.addf %69, %70 : vector<8x1xf32>
    %72 = math.rsqrt %71 : vector<8x1xf32>
    %73 = arith.mulf %51, %72 : vector<8x1xf32>
    %74 = vector.broadcast %73 : vector<8x1xf32> to vector<8x384xf32>
    %75 = arith.mulf %62, %74 : vector<8x384xf32>
    %76 = vector.broadcast %52 : vector<8x1xf32> to vector<8x384xf32>
    %77 = arith.addf %75, %76 : vector<8x384xf32>
    %cst_52 = arith.constant 0.00999999977 : f32
    %78 = vector.broadcast %cst_52 : f32 to vector<8x384xf32>
    %79 = arith.mulf %78, %77 : vector<8x384xf32>
    %80 = arith.maximumf %77, %79 : vector<8x384xf32>
    %81 = vector.broadcast %0 : vector<1x384xf32> to vector<8x384xf32>
    %82 = arith.mulf %80, %81 : vector<8x384xf32>
    %83 = arith.truncf %82 : vector<8x384xf32> to vector<8x384xbf16>
    %c0_53 = arith.constant 0 : index
    %c128 = arith.constant 128 : index
    %84 = vector.load %arg8[%c0_53, %c128] : memref<8x537xbf16, #tpu.memory_space<vmem>>, vector<8x384xbf16>
    tpu.vector_store %arg8[%c0_53, %c128], %83 {strides = array<i32>} : memref<8x537xbf16, #tpu.memory_space<vmem>>, vector<8x384xbf16>,
    %c0_54 = arith.constant 0 : index
    %c0_55 = arith.constant 0 : index
    %85 = vector.load %arg4[%c0_54, %c0_55] : memref<72x8xbf16, #tpu.memory_space<vmem>>, vector<8x8xbf16>
    %c0_56 = arith.constant 0 : index
    %c103 = arith.constant 103 : index
    %86 = vector.load %arg8[%c0_56, %c103] : memref<8x537xbf16, #tpu.memory_space<vmem>>, vector<8x384xbf16>
    %cst_57 = arith.constant dense<0.000000e+00> : vector<8x384xf32>
    %87 = tpu.matmul %85, %86, %cst_57 {dimension_numbers = #tpu.dot_dimension_numbers<[1], [0], [0], [1], [0, 0, 1, 1], [], []>} : vector<8x8xbf16>, vector<8x384xbf16>, vector<8x384xf32> -> vector<8x384xf32>
    %c8_58 = arith.constant 8 : index
    %c0_59 = arith.constant 0 : index
    %88 = vector.load %arg4[%c8_58, %c0_59] : memref<72x8xbf16, #tpu.memory_space<vmem>>, vector<8x8xbf16>
    %c0_60 = arith.constant 0 : index
    %c104 = arith.constant 104 : index
    %89 = vector.load %arg8[%c0_60, %c104] : memref<8x537xbf16, #tpu.memory_space<vmem>>, vector<8x384xbf16>
    %cst_61 = arith.constant dense<0.000000e+00> : vector<8x384xf32>
    %90 = tpu.matmul %88, %89, %cst_61 {dimension_numbers = #tpu.dot_dimension_numbers<[1], [0], [0], [1], [0, 0, 1, 1], [], []>} : vector<8x8xbf16>, vector<8x384xbf16>, vector<8x384xf32> -> vector<8x384xf32>
    %91 = arith.addf %87, %90 : vector<8x384xf32>
    %c16_62 = arith.constant 16 : index
    %c0_63 = arith.constant 0 : index
    %92 = vector.load %arg4[%c16_62, %c0_63] : memref<72x8xbf16, #tpu.memory_space<vmem>>, vector<8x8xbf16>
    %c0_64 = arith.constant 0 : index
    %c105 = arith.constant 105 : index
    %93 = vector.load %arg8[%c0_64, %c105] : memref<8x537xbf16, #tpu.memory_space<vmem>>, vector<8x384xbf16>
    %cst_65 = arith.constant dense<0.000000e+00> : vector<8x384xf32>
    %94 = tpu.matmul %92, %93, %cst_65 {dimension_numbers = #tpu.dot_dimension_numbers<[1], [0], [0], [1], [0, 0, 1, 1], [], []>} : vector<8x8xbf16>, vector<8x384xbf16>, vector<8x384xf32> -> vector<8x384xf32>
    %95 = arith.addf %91, %94 : vector<8x384xf32>
    %c24_66 = arith.constant 24 : index
    %c0_67 = arith.constant 0 : index
    %96 = vector.load %arg4[%c24_66, %c0_67] : memref<72x8xbf16, #tpu.memory_space<vmem>>, vector<8x8xbf16>
    %c0_68 = arith.constant 0 : index
    %c127 = arith.constant 127 : index
    %97 = vector.load %arg8[%c0_68, %c127] : memref<8x537xbf16, #tpu.memory_space<vmem>>, vector<8x384xbf16>
    %cst_69 = arith.constant dense<0.000000e+00> : vector<8x384xf32>
    %98 = tpu.matmul %96, %97, %cst_69 {dimension_numbers = #tpu.dot_dimension_numbers<[1], [0], [0], [1], [0, 0, 1, 1], [], []>} : vector<8x8xbf16>, vector<8x384xbf16>, vector<8x384xf32> -> vector<8x384xf32>
    %99 = arith.addf %95, %98 : vector<8x384xf32>
    %c32_70 = arith.constant 32 : index
    %c0_71 = arith.constant 0 : index
    %100 = vector.load %arg4[%c32_70, %c0_71] : memref<72x8xbf16, #tpu.memory_space<vmem>>, vector<8x8xbf16>
    %c0_72 = arith.constant 0 : index
    %c128_73 = arith.constant 128 : index
    %101 = vector.load %arg8[%c0_72, %c128_73] : memref<8x537xbf16, #tpu.memory_space<vmem>>, vector<8x384xbf16>
    %cst_74 = arith.constant dense<0.000000e+00> : vector<8x384xf32>
    %102 = tpu.matmul %100, %101, %cst_74 {dimension_numbers = #tpu.dot_dimension_numbers<[1], [0], [0], [1], [0, 0, 1, 1], [], []>} : vector<8x8xbf16>, vector<8x384xbf16>, vector<8x384xf32> -> vector<8x384xf32>
    %103 = arith.addf %99, %102 : vector<8x384xf32>
    %c40_75 = arith.constant 40 : index
    %c0_76 = arith.constant 0 : index
    %104 = vector.load %arg4[%c40_75, %c0_76] : memref<72x8xbf16, #tpu.memory_space<vmem>>, vector<8x8xbf16>
    %c0_77 = arith.constant 0 : index
    %c129 = arith.constant 129 : index
    %105 = vector.load %arg8[%c0_77, %c129] : memref<8x537xbf16, #tpu.memory_space<vmem>>, vector<8x384xbf16>
    %cst_78 = arith.constant dense<0.000000e+00> : vector<8x384xf32>
    %106 = tpu.matmul %104, %105, %cst_78 {dimension_numbers = #tpu.dot_dimension_numbers<[1], [0], [0], [1], [0, 0, 1, 1], [], []>} : vector<8x8xbf16>, vector<8x384xbf16>, vector<8x384xf32> -> vector<8x384xf32>
    %107 = arith.addf %103, %106 : vector<8x384xf32>
    %c48_79 = arith.constant 48 : index
    %c0_80 = arith.constant 0 : index
    %108 = vector.load %arg4[%c48_79, %c0_80] : memref<72x8xbf16, #tpu.memory_space<vmem>>, vector<8x8xbf16>
    %c0_81 = arith.constant 0 : index
    %c151 = arith.constant 151 : index
    %109 = vector.load %arg8[%c0_81, %c151] : memref<8x537xbf16, #tpu.memory_space<vmem>>, vector<8x384xbf16>
    %cst_82 = arith.constant dense<0.000000e+00> : vector<8x384xf32>
    %110 = tpu.matmul %108, %109, %cst_82 {dimension_numbers = #tpu.dot_dimension_numbers<[1], [0], [0], [1], [0, 0, 1, 1], [], []>} : vector<8x8xbf16>, vector<8x384xbf16>, vector<8x384xf32> -> vector<8x384xf32>
    %111 = arith.addf %107, %110 : vector<8x384xf32>
    %c56_83 = arith.constant 56 : index
    %c0_84 = arith.constant 0 : index
    %112 = vector.load %arg4[%c56_83, %c0_84] : memref<72x8xbf16, #tpu.memory_space<vmem>>, vector<8x8xbf16>
    %c0_85 = arith.constant 0 : index
    %c152 = arith.constant 152 : index
    %113 = vector.load %arg8[%c0_85, %c152] : memref<8x537xbf16, #tpu.memory_space<vmem>>, vector<8x384xbf16>
    %cst_86 = arith.constant dense<0.000000e+00> : vector<8x384xf32>
    %114 = tpu.matmul %112, %113, %cst_86 {dimension_numbers = #tpu.dot_dimension_numbers<[1], [0], [0], [1], [0, 0, 1, 1], [], []>} : vector<8x8xbf16>, vector<8x384xbf16>, vector<8x384xf32> -> vector<8x384xf32>
    %115 = arith.addf %111, %114 : vector<8x384xf32>
    %c64_87 = arith.constant 64 : index
    %c0_88 = arith.constant 0 : index
    %116 = vector.load %arg4[%c64_87, %c0_88] : memref<72x8xbf16, #tpu.memory_space<vmem>>, vector<8x8xbf16>
    %c0_89 = arith.constant 0 : index
    %c153 = arith.constant 153 : index
    %117 = vector.load %arg8[%c0_89, %c153] : memref<8x537xbf16, #tpu.memory_space<vmem>>, vector<8x384xbf16>
    %cst_90 = arith.constant dense<0.000000e+00> : vector<8x384xf32>
    %118 = tpu.matmul %116, %117, %cst_90 {dimension_numbers = #tpu.dot_dimension_numbers<[1], [0], [0], [1], [0, 0, 1, 1], [], []>} : vector<8x8xbf16>, vector<8x384xbf16>, vector<8x384xf32> -> vector<8x384xf32>
    %119 = arith.addf %115, %118 : vector<8x384xf32>
    %c0_91 = arith.constant 0 : index
    %c0_92 = arith.constant 0 : index
    %120 = vector.load %arg5[%c0_91, %c0_92] : memref<8x3xf32, #tpu.memory_space<vmem>>, vector<8x3xf32>
    %121 = vector.extract_strided_slice %120 {offsets = [0, 0], sizes = [8, 1], strides = [1, 1]} : vector<8x3xf32> to vector<8x1xf32>
    %122 = vector.extract_strided_slice %120 {offsets = [0, 1], sizes = [8, 1], strides = [1, 1]} : vector<8x3xf32> to vector<8x1xf32>
    %123 = vector.extract_strided_slice %120 {offsets = [0, 2], sizes = [8, 1], strides = [1, 1]} : vector<8x3xf32> to vector<8x1xf32>
    %124 = vector.broadcast %121 : vector<8x1xf32> to vector<8x384xf32>
    %125 = arith.addf %119, %124 : vector<8x384xf32>
    %126 = vector.broadcast %0 : vector<1x384xf32> to vector<8x384xf32>
    %127 = arith.mulf %125, %126 : vector<8x384xf32>
    %cst_93 = arith.constant dense<0.000000e+00> : vector<8xf32>
    %128 = vector.multi_reduction <add>, %127, %cst_93 [1] : vector<8x384xf32> to vector<8xf32>
    %129 = vector.shape_cast %128 : vector<8xf32> to vector<8x1xf32>
    %cst_94 = arith.constant 3.906250e-03 : f32
    %130 = vector.broadcast %cst_94 : f32 to vector<8x1xf32>
    %131 = arith.mulf %129, %130 : vector<8x1xf32>
    %132 = vector.broadcast %131 : vector<8x1xf32> to vector<8x384xf32>
    %133 = arith.subf %125, %132 : vector<8x384xf32>
    %134 = vector.broadcast %0 : vector<1x384xf32> to vector<8x384xf32>
    %135 = arith.mulf %133, %134 : vector<8x384xf32>
    %136 = arith.mulf %135, %135 : vector<8x384xf32>
    %cst_95 = arith.constant dense<0.000000e+00> : vector<8xf32>
    %137 = vector.multi_reduction <add>, %136, %cst_95 [1] : vector<8x384xf32> to vector<8xf32>
    %138 = vector.shape_cast %137 : vector<8xf32> to vector<8x1xf32>
    %cst_96 = arith.constant 3.906250e-03 : f32
    %139 = vector.broadcast %cst_96 : f32 to vector<8x1xf32>
    %140 = arith.mulf %138, %139 : vector<8x1xf32>
    %cst_97 = arith.constant 9.99999974E-6 : f32
    %141 = vector.broadcast %cst_97 : f32 to vector<8x1xf32>
    %142 = arith.addf %140, %141 : vector<8x1xf32>
    %143 = math.rsqrt %142 : vector<8x1xf32>
    %144 = arith.mulf %122, %143 : vector<8x1xf32>
    %145 = vector.broadcast %144 : vector<8x1xf32> to vector<8x384xf32>
    %146 = arith.mulf %133, %145 : vector<8x384xf32>
    %147 = vector.broadcast %123 : vector<8x1xf32> to vector<8x384xf32>
    %148 = arith.addf %146, %147 : vector<8x384xf32>
    %cst_98 = arith.constant 0.00999999977 : f32
    %149 = vector.broadcast %cst_98 : f32 to vector<8x384xf32>
    %150 = arith.mulf %149, %148 : vector<8x384xf32>
    %151 = arith.maximumf %148, %150 : vector<8x384xf32>
    %152 = arith.truncf %151 : vector<8x384xf32> to vector<8x384xbf16>
    %c0_99 = arith.constant 0 : index
    %c0_100 = arith.constant 0 : index
    %c0_101 = arith.constant 0 : index
    %153 = vector.load %arg7[%c0_99, %c0_100, %c0_101] : memref<1x8x384xbf16, #tpu.memory_space<vmem>>, vector<1x8x384xbf16>
    %154 = vector.shape_cast %153 : vector<1x8x384xbf16> to vector<8x384xbf16>
    %155 = vector.shape_cast %152 : vector<8x384xbf16> to vector<1x8x384xbf16>
    tpu.vector_store %arg7[%c0_99, %c0_100, %c0_101], %155 {strides = array<i32>} : memref<1x8x384xbf16, #tpu.memory_space<vmem>>, vector<1x8x384xbf16>,
    return
  }
  func.func @transform_0(%arg0: i32) -> (i32, i32, i32) {
    %c0_i32 = arith.constant 0 : i32
    %c0_i32_0 = arith.constant 0 : i32
    %c0_i32_1 = arith.constant 0 : i32
    return %arg0, %c0_i32, %c0_i32_0 : i32, i32, i32
  }
  func.func @transform_1(%arg0: i32) -> (i32, i32) {
    %c0_i32 = arith.constant 0 : i32
    %c0_i32_0 = arith.constant 0 : i32
    %c0_i32_1 = arith.constant 0 : i32
    return %c0_i32, %c0_i32_0 : i32, i32
  }
  func.func @transform_2(%arg0: i32) -> (i32, i32) {
    %c0_i32 = arith.constant 0 : i32
    %c0_i32_0 = arith.constant 0 : i32
    %c0_i32_1 = arith.constant 0 : i32
    return %c0_i32, %c0_i32_0 : i32, i32
  }
  func.func @transform_3(%arg0: i32) -> (i32, i32) {
    %c0_i32 = arith.constant 0 : i32
    %c0_i32_0 = arith.constant 0 : i32
    %c0_i32_1 = arith.constant 0 : i32
    return %c0_i32, %c0_i32_0 : i32, i32
  }
  func.func @transform_4(%arg0: i32) -> (i32, i32) {
    %c0_i32 = arith.constant 0 : i32
    %c0_i32_0 = arith.constant 0 : i32
    %c0_i32_1 = arith.constant 0 : i32
    return %c0_i32, %c0_i32_0 : i32, i32
  }
  func.func @transform_5(%arg0: i32) -> (i32, i32) {
    %c0_i32 = arith.constant 0 : i32
    %c0_i32_0 = arith.constant 0 : i32
    %c0_i32_1 = arith.constant 0 : i32
    return %c0_i32, %c0_i32_0 : i32, i32
  }
  func.func @transform_6(%arg0: i32) -> (i32, i32, i32) {
    %c0_i32 = arith.constant 0 : i32
    %c0_i32_0 = arith.constant 0 : i32
    %c0_i32_1 = arith.constant 0 : i32
    return %arg0, %c0_i32, %c0_i32_0 : i32, i32, i32
  }
}

</mosaic_0001>

<llo_original>
// kernel: stage_forward.1
$region0: #{stage_forward.1}
  #allocation0 [shape = 'u32[]', space=smem, size = 0x4, offset = 0x4, fixed_abs, tag = 'smem constant byte address 0x4 - core index']
  #allocation1 [shape = 'u32[144,128]{1,0:T(1,128)}', space=vmem, size = 0x12000, scoped, tag = 'internal scratch']
  #allocation2 [shape = 'bf16[8,537]{1,0:T(8,128)(2,1)}', space=vmem, size = 0x2800, scoped, tag = 'scratch operand']
  %s0 = inlined_call_operand.vmem [shape: bf16[2,4,456], index: 0, kind: input, shape index: {}]
  %s1 = inlined_call_operand.vmem [shape: bf16[72,4], index: 1, kind: input, shape index: {}]
  %s2 = inlined_call_operand.vmem [shape: f32[8,3], index: 2, kind: input, shape index: {}]
  %s3 = inlined_call_operand.vmem [shape: bf16[72,8], index: 3, kind: input, shape index: {}]
  %s4 = inlined_call_operand.vmem [shape: f32[8,3], index: 4, kind: input, shape index: {}]
  %s5 = inlined_call_operand.vmem [shape: f32[1,384], index: 5, kind: input, shape index: {}]
  %s6 = inlined_call_operand.vmem [shape: bf16[2,8,384], index: 6, kind: output, shape index: {}]
  %s7 = sld [smem:[#allocation0]]
  $region57: #{stage_forward.1} parent=0
    _
  %s9 = ssub.s32 1, %s7
  %s10 = scalar_select 0, %s9, %s7
  loop: start=0, step=1, limit=4
  $region2: #{stage_forward.1} parent=0 // loop_pre_header
    _
  $region3: #{stage_forward.1} parent=0 // loop_header
    %s12 = sphi 0, %s16
    %p13 = scmp.ge.s32.totalorder %s12, 4
    %s22 = sphi 0, %s24
    %s25 = sphi 0, %s22
    %s26 = sphi 0, %s25
    %s42 = sphi 0, %s26
    %s46 = sphi 0, %s46
    %s48 = sphi 0, %s46
    %s49 = sphi 0, %s48
    %s63 = sphi 0, %s49
    %s67 = sphi 0, %s67
    %s69 = sphi 0, %s67
    %s70 = sphi 0, %s69
    %s84 = sphi 0, %s70
    %s88 = sphi 0, %s88
    %s90 = sphi 0, %s88
    %s91 = sphi 0, %s90
    %s105 = sphi 0, %s91
    %s109 = sphi 0, %s109
    %s111 = sphi 0, %s109
    %s112 = sphi 0, %s111
    %s126 = sphi 0, %s112
    %s130 = sphi 0, %s130
    %s132 = sphi 0, %s130
    %s133 = sphi 0, %s132
    %s147 = sphi 0, %s133
    %s153 = sphi 0, %s155
    %s156 = sphi 0, %s153
    %s157 = sphi 0, %s156
    %s173 = sphi 0, %s157
  $region4: #{stage_forward.1} parent=0 // loop_header_branch
    %15 = sbr.rel (%p13) target = $region8
  $region5: #{stage_forward.1} parent=0 // loop_body
    %s17 = ssub.s32 %s12, 1
    %s18 = ssub.s32 %s12, 2
    %s19 = sadd.s32 %s12, 1
    %s20 = ssub.s32 %s12, %s19
    %p21 = scmp.eq.s32.totalorder %s20, 0
    %s23 = sadd.s32 %s22, 1
    %s24 = scalar_select %p21, %s22, %s23
    %p27 = pneg %p21
    %p28 = scmp.eq.s32.totalorder %s12, 1
    %p29 = por %p27, %p28
    %p30 = scmp.ne.s32.totalorder %s22, %s25
    %p31 = scmp.eq.s32.totalorder %s12, 0
    %p32 = por %p30, %p31
    %p33 = scmp.ne.s32.totalorder %s22, %s25
    %p34 = scmp.eq.s32.totalorder %s17, 1
    %p35 = por %p33, %p34
    %p36 = scmp.ne.s32.totalorder %s25, %s26
    %p37 = scmp.eq.s32.totalorder %s17, 0
    %p38 = por %p36, %p37
    %p39 = scmp.ne.s32.totalorder %s25, %s26
    %p40 = scmp.eq.s32.totalorder %s18, 1
    %p41 = por %p39, %p40
    %p43 = scmp.ne.s32.totalorder %s26, %s42
    %p44 = scmp.eq.s32.totalorder %s18, 0
    %p45 = por %p43, %p44
    %s47 = sadd.s32 %s46, 1
    %p50 = scmp.eq.s32.totalorder %s12, 1
    %p51 = scmp.ne.s32.totalorder %s46, %s48
    %p52 = scmp.eq.s32.totalorder %s12, 0
    %p53 = por %p51, %p52
    %p54 = scmp.ne.s32.totalorder %s46, %s48
    %p55 = scmp.eq.s32.totalorder %s17, 1
    %p56 = por %p54, %p55
    %p57 = scmp.ne.s32.totalorder %s48, %s49
    %p58 = scmp.eq.s32.totalorder %s17, 0
    %p59 = por %p57, %p58
    %p60 = scmp.ne.s32.totalorder %s48, %s49
    %p61 = scmp.eq.s32.totalorder %s18, 1
    %p62 = por %p60, %p61
    %p64 = scmp.ne.s32.totalorder %s49, %s63
    %p65 = scmp.eq.s32.totalorder %s18, 0
    %p66 = por %p64, %p65
    %s68 = sadd.s32 %s67, 1
    %p71 = scmp.eq.s32.totalorder %s12, 1
    %p72 = scmp.ne.s32.totalorder %s67, %s69
    %p73 = scmp.eq.s32.totalorder %s12, 0
    %p74 = por %p72, %p73
    %p75 = scmp.ne.s32.totalorder %s67, %s69
    %p76 = scmp.eq.s32.totalorder %s17, 1
    %p77 = por %p75, %p76
    %p78 = scmp.ne.s32.totalorder %s69, %s70
    %p79 = scmp.eq.s32.totalorder %s17, 0
    %p80 = por %p78, %p79
    %p81 = scmp.ne.s32.totalorder %s69, %s70
    %p82 = scmp.eq.s32.totalorder %s18, 1
    %p83 = por %p81, %p82
    %p85 = scmp.ne.s32.totalorder %s70, %s84
    %p86 = scmp.eq.s32.totalorder %s18, 0
    %p87 = por %p85, %p86
    %s89 = sadd.s32 %s88, 1
    %p92 = scmp.eq.s32.totalorder %s12, 1
    %p93 = scmp.ne.s32.totalorder %s88, %s90
    %p94 = scmp.eq.s32.totalorder %s12, 0
    %p95 = por %p93, %p94
    %p96 = scmp.ne.s32.totalorder %s88, %s90
    %p97 = scmp.eq.s32.totalorder %s17, 1
    %p98 = por %p96, %p97
    %p99 = scmp.ne.s32.totalorder %s90, %s91
    %p100 = scmp.eq.s32.totalorder %s17, 0
    %p101 = por %p99, %p100
    %p102 = scmp.ne.s32.totalorder %s90, %s91
    %p103 = scmp.eq.s32.totalorder %s18, 1
    %p104 = por %p102, %p103
    %p106 = scmp.ne.s32.totalorder %s91, %s105
    %p107 = scmp.eq.s32.totalorder %s18, 0
    %p108 = por %p106, %p107
    %s110 = sadd.s32 %s109, 1
    %p113 = scmp.eq.s32.totalorder %s12, 1
    %p114 = scmp.ne.s32.totalorder %s109, %s111
    %p115 = scmp.eq.s32.totalorder %s12, 0
    %p116 = por %p114, %p115
    %p117 = scmp.ne.s32.totalorder %s109, %s111
    %p118 = scmp.eq.s32.totalorder %s17, 1
    %p119 = por %p117, %p118
    %p120 = scmp.ne.s32.totalorder %s111, %s112
    %p121 = scmp.eq.s32.totalorder %s17, 0
    %p122 = por %p120, %p121
    %p123 = scmp.ne.s32.totalorder %s111, %s112
    %p124 = scmp.eq.s32.totalorder %s18, 1
    %p125 = por %p123, %p124
    %p127 = scmp.ne.s32.totalorder %s112, %s126
    %p128 = scmp.eq.s32.totalorder %s18, 0
    %p129 = por %p127, %p128
    %s131 = sadd.s32 %s130, 1
    %p134 = scmp.eq.s32.totalorder %s12, 1
    %p135 = scmp.ne.s32.totalorder %s130, %s132
    %p136 = scmp.eq.s32.totalorder %s12, 0
    %p137 = por %p135, %p136
    %p138 = scmp.ne.s32.totalorder %s130, %s132
    %p139 = scmp.eq.s32.totalorder %s17, 1
    %p140 = por %p138, %p139
    %p141 = scmp.ne.s32.totalorder %s132, %s133
    %p142 = scmp.eq.s32.totalorder %s17, 0
    %p143 = por %p141, %p142
    %p144 = scmp.ne.s32.totalorder %s132, %s133
    %p145 = scmp.eq.s32.totalorder %s18, 1
    %p146 = por %p144, %p145
    %p148 = scmp.ne.s32.totalorder %s133, %s147
    %p149 = scmp.eq.s32.totalorder %s18, 0
    %p150 = por %p148, %p149
    %s151 = ssub.s32 %s12, %s19
    %p152 = scmp.eq.s32.totalorder %s151, 0
    %s154 = sadd.s32 %s153, 1
    %s155 = scalar_select %p152, %s153, %s154
    %p158 = pneg %p152
    %p159 = scmp.eq.s32.totalorder %s12, 1
    %p160 = por %p158, %p159
    %p161 = scmp.ne.s32.totalorder %s153, %s156
    %p162 = scmp.eq.s32.totalorder %s12, 0
    %p163 = por %p161, %p162
    %p164 = scmp.ne.s32.totalorder %s153, %s156
    %p165 = scmp.eq.s32.totalorder %s17, 1
    %p166 = por %p164, %p165
    %p167 = scmp.ne.s32.totalorder %s156, %s157
    %p168 = scmp.eq.s32.totalorder %s17, 0
    %p169 = por %p167, %p168
    %p170 = scmp.ne.s32.totalorder %s156, %s157
    %p171 = scmp.eq.s32.totalorder %s18, 1
    %p172 = por %p170, %p171
    %p174 = scmp.ne.s32.totalorder %s157, %s173
    %p175 = scmp.eq.s32.totalorder %s18, 0
    %p176 = por %p174, %p175
    %p177 = scmp.le.s32.totalorder 1, %s12
    %p178 = scmp.lt.s32.totalorder %s12, 3
    %p179 = pnand %p177, %p178
    %p180 = pneg %p179
    // Predicated region
    $region9: #{stage_forward.1} parent=5 // pred_check
      _
    $region10: #{stage_forward.1} parent=5 // pred_check_branch
      %182 = sbr.rel (%p179) target = $region12
    $region11: #{stage_forward.1} parent=5 // pred_region
      %s183 = ssub.s32 %s12, 1
      // Predicated region
      $region13: #{stage_forward.1} parent=11 // pred_check
        %p184 = pneg %p59
      $region14: #{stage_forward.1} parent=11 // pred_check_branch
        %186 = sbr.rel (%p184) target = $region16
      $region15: #{stage_forward.1} parent=11 // pred_region
        _
      $region16: #{stage_forward.1} parent=11 // pred_fallthru
        _
      // Predicated region
      $region17: #{stage_forward.1} parent=11 // pred_check
        %p187 = pneg %p80
      $region18: #{stage_forward.1} parent=11 // pred_check_branch
        %189 = sbr.rel (%p187) target = $region20
      $region19: #{stage_forward.1} parent=11 // pred_region
        _
      $region20: #{stage_forward.1} parent=11 // pred_fallthru
        _
      // Predicated region
      $region21: #{stage_forward.1} parent=11 // pred_check
        %p190 = pneg %p101
      $region22: #{stage_forward.1} parent=11 // pred_check_branch
        %192 = sbr.rel (%p190) target = $region24
      $region23: #{stage_forward.1} parent=11 // pred_region
        _
      $region24: #{stage_forward.1} parent=11 // pred_fallthru
        _
      // Predicated region
      $region25: #{stage_forward.1} parent=11 // pred_check
        %p193 = pneg %p122
      $region26: #{stage_forward.1} parent=11 // pred_check_branch
        %195 = sbr.rel (%p193) target = $region28
      $region27: #{stage_forward.1} parent=11 // pred_region
        _
      $region28: #{stage_forward.1} parent=11 // pred_fallthru
        _
      // Predicated region
      $region29: #{stage_forward.1} parent=11 // pred_check
        %p196 = pneg %p143
      $region30: #{stage_forward.1} parent=11 // pred_check_branch
        %198 = sbr.rel (%p196) target = $region32
      $region31: #{stage_forward.1} parent=11 // pred_region
        _
      $region32: #{stage_forward.1} parent=11 // pred_fallthru
        _
    $region12: #{stage_forward.1} parent=5 // pred_fallthru
      _
    %p199 = scmp.lt.s32.totalorder %s12, 2
    // Predicated region
    $region33: #{stage_forward.1} parent=5 // pred_check
      %p200 = pneg %p199
    $region34: #{stage_forward.1} parent=5 // pred_check_branch
      %202 = sbr.rel (%p200) target = $region36
    $region35: #{stage_forward.1} parent=5 // pred_region
      // Predicated region
      $region37: #{stage_forward.1} parent=35 // pred_check
        %p203 = pneg %p32
      $region38: #{stage_forward.1} parent=35 // pred_check_branch
        %205 = sbr.rel (%p203) target = $region40
      $region39: #{stage_forward.1} parent=35 // pred_region
        %p206 = scmp.lt.s32.totalorder %s12, 1
        %s207 = scalar_select %p206, %s12, 1
        %s208 = smul.addr %s207, 4
        %s209 = smul.addr %s208, 2
        %s210 = scalar_lea.vmem %s0, %s209
      $region40: #{stage_forward.1} parent=35 // pred_fallthru
        _
    $region36: #{stage_forward.1} parent=5 // pred_fallthru
      _
    %p211 = scmp.le.s32.totalorder 1, %s12
    %p212 = scmp.lt.s32.totalorder %s12, 3
    %p213 = pnand %p211, %p212
    %p214 = pneg %p213
    // Predicated region
    $region41: #{stage_forward.1} parent=5 // pred_check
      _
    $region42: #{stage_forward.1} parent=5 // pred_check_branch
      %216 = sbr.rel (%p213) target = $region44
    $region43: #{stage_forward.1} parent=5 // pred_region
      %s217 = ssub.s32 %s12, 1
      %p218 = scmp.lt.s32.totalorder %s17, 1
      %s219 = scalar_select %p218, %s17, 1
      %s220 = smul.addr %s219, 4
      %s221 = smul.addr %s220, 2
      %s222 = scalar_lea.vmem %s0, %s221
      %p223 = pneg %p38
      %p224 = pneg %p35
      %p225 = pneg %p59
      %p226 = pneg %p56
      %p227 = pneg %p80
      %p228 = pneg %p77
      %p229 = pneg %p101
      %p230 = pneg %p98
      %p231 = pneg %p122
      %p232 = pneg %p119
      %p233 = pneg %p143
      %p234 = pneg %p140
      %p235 = pneg %p169
      %p236 = pneg %p166
      %p237 = scmp.lt.s32.totalorder %s17, 1
      %s238 = scalar_select %p237, %s17, 1
      %s239 = smul.addr %s238, 3
      %s240 = smul.addr %s239, 4
      %s241 = scalar_lea.vmem %s6, %s240
      %p242 = scmp.lt.s32.totalorder %s17, 1
      %s243 = scalar_select %p242, %s17, 1
      %s244 = smul.addr %s243, 4
      %s245 = smul.addr %s244, 2
      %s246 = scalar_lea.vmem %s0, %s245
      %p247 = scmp.lt.s32.totalorder %s17, 1
      %s248 = scalar_select %p247, %s17, 1
      %s249 = smul.addr %s248, 3
      %s250 = smul.addr %s249, 4
      %s251 = scalar_lea.vmem %s6, %s250
      %v253 = vld [vmem:[%s5] sm:$0x7]
      %254 = vst [vmem:[#allocation2] sm:$0xf] 0
      %vm255 = vcmask 199680
      %256 = vst.msk [vmem:[#allocation2 + $0x10] sm:$0xf] %vm255, 0
      %v257 = vld [vmem:[%s1] sm:$0xf]
      %v258 = vld [vmem:[%s246] sm:$0x3f]
      %v259 = vld [vmem:[%s1 + $0x4] sm:$0xf]
      %v260 = vld [vmem:[%s246] sm:$0xff]
      %v262 = vcombine.high %v260, %v260
      %v264 = vunpack.c.l.s4 1983009808
      %v265 = vunpack.c.0.s8 %v264
      %v266 = vlaneseq
      %v267 = vshrl.u32 %v266, 7
      %v268 = vsub.s32 %v265, %v267
      %v269 = vrot.slane %v260, %v268
      %v271 = vunpack.c.l.s4 1983009808
      %v272 = vunpack.c.0.s8 %v271
      %v273 = vlaneseq
      %v274 = vshrl.u32 %v273, 7
      %v275 = vsub.s32 %v272, %v274
      %v276 = vrot.slane %v262, %v275
      %v277 = vcombine.high %v269, %v269
      %v278 = vcombine.high %v276, %v276
      %279 = vrot.lane.b32.xlu0 %v269, 127
      %v280 = vpop.permute.xlu0 %279
      %281 = vrot.lane.b32.xlu0 %v277, 127
      %v282 = vpop.permute.xlu0 %281
      %283 = vrot.lane.b32.xlu0 %v276, 127
      %v284 = vpop.permute.xlu0 %283
      %285 = vrot.lane.b32.xlu0 %v278, 127
      %v286 = vpop.permute.xlu0 %285
      %vm287 = vcmask 1039360
      %v288 = vsel %vm287, %v280, %v282
      %v289 = vsel %vm287, %v282, %v284
      %v290 = vsel %vm287, %v284, %v286
      %vm291 = vcmask 31744
      %v293 = vsel %vm291, %v259, 0
      %vm295 = vcmask 1041408
      %v297 = vsel %vm295, %v288, 0
      %v300 = vsel %vm295, %v289, 0
      %v303 = vsel %vm295, %v290, 0
      %305 = vmatprep.subr.bf16.mxu0 %v300
      %306 = vmatpush1.bf16.msra.mxu0 %v297
      %307 = vmatprep.subr.bf16.mxu0 0
      %308 = vmatpush1.bf16.msra.mxu0 0
      %309 = vmatprep.subr.bf16.mxu0 0
      %310 = vmatpush1.bf16.msra.mxu0 0
      %311 = vmatprep.subr.bf16.mxu0 0
      %312 = vmatpush1.bf16.msra.mxu0 0
      %313 = vmatprep.subr.bf16.mxu0 0
      %314 = vmatpush1.bf16.msra.mxu0 0
      %315 = vmatprep.subr.bf16.mxu0 0
      %316 = vmatpush1.bf16.msra.mxu0 0
      %317 = vmatprep.subr.bf16.mxu0 0
      %318 = vmatpush1.bf16.msra.mxu0 0
      %319 = vmatprep.subr.bf16.mxu0 0
      %320 = vmatpush1.bf16.msra.mxu0 0
      %321 = vmatprep.subr.bf16.mxu0 0
      %322 = vmatpush1.bf16.msra.mxu0 0
      %323 = vmatprep.subr.bf16.mxu0 0
      %324 = vmatpush1.bf16.msra.mxu0 0
      %325 = vmatprep.subr.bf16.mxu0 0
      %326 = vmatpush1.bf16.msra.mxu0 0
      %327 = vmatprep.subr.bf16.mxu0 0
      %328 = vmatpush1.bf16.msra.mxu0 0
      %329 = vmatprep.subr.bf16.mxu0 0
      %330 = vmatpush1.bf16.msra.mxu0 0
      %331 = vmatprep.subr.bf16.mxu0 0
      %332 = vmatpush1.bf16.msra.mxu0 0
      %333 = vmatprep.subr.bf16.mxu0 0
      %334 = vmatpush1.bf16.msra.mxu0 0
      %335 = vmatprep.subr.bf16.mxu0 0
      %336 = vmatpush1.bf16.msra.mxu0 0
      %337 = vmatprep.mubr.bf16.mxu0 0
      %338 = vmatmul.mubr.bf16.gmra.mrb[0].mxu0 %v293
      %v339 = vpop.f32.mrb[0].mxu0
      %v340 = vadd.f32 0.0, %v339
      %v341 = vpop.f32.mrb[0].mxu0
      %v342 = vadd.f32 0.0, %v341
      %v343 = vpop.f32.mrb[0].mxu0
      %v344 = vpop.f32.mrb[0].mxu0
      %345 = vdwg.mxu0
      %346 = vmatprep.subr.bf16.mxu0 0
      %347 = vmatpush1.bf16.msra.mxu0 %v303
      %348 = vmatprep.subr.bf16.mxu0 0
      %349 = vmatpush1.bf16.msra.mxu0 0
      %350 = vmatprep.subr.bf16.mxu0 0
      %351 = vmatpush1.bf16.msra.mxu0 0
      %352 = vmatprep.subr.bf16.mxu0 0
      %353 = vmatpush1.bf16.msra.mxu0 0
      %354 = vmatprep.subr.bf16.mxu0 0
      %355 = vmatpush1.bf16.msra.mxu0 0
      %356 = vmatprep.subr.bf16.mxu0 0
      %357 = vmatpush1.bf16.msra.mxu0 0
      %358 = vmatprep.subr.bf16.mxu0 0
      %359 = vmatpush1.bf16.msra.mxu0 0
      %360 = vmatprep.subr.bf16.mxu0 0
      %361 = vmatpush1.bf16.msra.mxu0 0
      %362 = vmatprep.subr.bf16.mxu0 0
      %363 = vmatpush1.bf16.msra.mxu0 0
      %364 = vmatprep.subr.bf16.mxu0 0
      %365 = vmatpush1.bf16.msra.mxu0 0
      %366 = vmatprep.subr.bf16.mxu0 0
      %367 = vmatpush1.bf16.msra.mxu0 0
      %368 = vmatprep.subr.bf16.mxu0 0
      %369 = vmatpush1.bf16.msra.mxu0 0
      %370 = vmatprep.subr.bf16.mxu0 0
      %371 = vmatpush1.bf16.msra.mxu0 0
      %372 = vmatprep.subr.bf16.mxu0 0
      %373 = vmatpush1.bf16.msra.mxu0 0
      %374 = vmatprep.subr.bf16.mxu0 0
      %375 = vmatpush1.bf16.msra.mxu0 0
      %376 = vmatprep.subr.bf16.mxu0 0
      %377 = vmatpush1.bf16.msra.mxu0 0
      %378 = vmatprep.mubr.bf16.mxu0 0
      %379 = vmatmul.mubr.bf16.gmra.mrb[0].mxu0 %v293
      %v380 = vpop.f32.mrb[0].mxu0
      %v381 = vadd.f32 0.0, %v380
      %v382 = vpop.f32.mrb[0].mxu0
      %v383 = vpop.f32.mrb[0].mxu0
      %v384 = vpop.f32.mrb[0].mxu0
      %385 = vdwg.mxu0
      %v387 = vcombine.high %v258, %v258
      %v389 = vunpack.c.l.s4 1983009808
      %v390 = vunpack.c.0.s8 %v389
      %v391 = vlaneseq
      %v392 = vshrl.u32 %v391, 7
      %v393 = vsub.s32 %v390, %v392
      %v394 = vrot.slane %v258, %v393
      %v396 = vunpack.c.l.s4 1983009808
      %v397 = vunpack.c.0.s8 %v396
      %v398 = vlaneseq
      %v399 = vshrl.u32 %v398, 7
      %v400 = vsub.s32 %v397, %v399
      %v401 = vrot.slane %v387, %v400
      %v402 = vcombine.high %v394, %v394
      %v404 = vsel %vm291, %v257, 0
      %v407 = vsel %vm295, %v394, 0
      %v410 = vsel %vm295, %v402, 0
      %v413 = vsel %vm295, %v401, 0
      %415 = vmatprep.subr.bf16.mxu0 %v410
      %416 = vmatpush1.bf16.msra.mxu0 %v407
      %417 = vmatprep.subr.bf16.mxu0 0
      %418 = vmatpush1.bf16.msra.mxu0 0
      %419 = vmatprep.subr.bf16.mxu0 0
      %420 = vmatpush1.bf16.msra.mxu0 0
      %421 = vmatprep.subr.bf16.mxu0 0
      %422 = vmatpush1.bf16.msra.mxu0 0
      %423 = vmatprep.subr.bf16.mxu0 0
      %424 = vmatpush1.bf16.msra.mxu0 0
      %425 = vmatprep.subr.bf16.mxu0 0
      %426 = vmatpush1.bf16.msra.mxu0 0
      %427 = vmatprep.subr.bf16.mxu0 0
      %428 = vmatpush1.bf16.msra.mxu0 0
      %429 = vmatprep.subr.bf16.mxu0 0
      %430 = vmatpush1.bf16.msra.mxu0 0
      %431 = vmatprep.subr.bf16.mxu0 0
      %432 = vmatpush1.bf16.msra.mxu0 0
      %433 = vmatprep.subr.bf16.mxu0 0
      %434 = vmatpush1.bf16.msra.mxu0 0
      %435 = vmatprep.subr.bf16.mxu0 0
      %436 = vmatpush1.bf16.msra.mxu0 0
      %437 = vmatprep.subr.bf16.mxu0 0
      %438 = vmatpush1.bf16.msra.mxu0 0
      %439 = vmatprep.subr.bf16.mxu0 0
      %440 = vmatpush1.bf16.msra.mxu0 0
      %441 = vmatprep.subr.bf16.mxu0 0
      %442 = vmatpush1.bf16.msra.mxu0 0
      %443 = vmatprep.subr.bf16.mxu0 0
      %444 = vmatpush1.bf16.msra.mxu0 0
      %445 = vmatprep.subr.bf16.mxu0 0
      %446 = vmatpush1.bf16.msra.mxu0 0
      %447 = vmatprep.mubr.bf16.mxu0 0
      %448 = vmatmul.mubr.bf16.gmra.mrb[0].mxu0 %v404
      %v449 = vpop.f32.mrb[0].mxu0
      %v450 = vadd.f32 %v340, %v449
      %v451 = vpop.f32.mrb[0].mxu0
      %v452 = vadd.f32 %v342, %v451
      %v453 = vpop.f32.mrb[0].mxu0
      %v454 = vpop.f32.mrb[0].mxu0
      %455 = vdwg.mxu0
      %456 = vmatprep.subr.bf16.mxu0 0
      %457 = vmatpush1.bf16.msra.mxu0 %v413
      %458 = vmatprep.subr.bf16.mxu0 0
      %459 = vmatpush1.bf16.msra.mxu0 0
      %460 = vmatprep.subr.bf16.mxu0 0
      %461 = vmatpush1.bf16.msra.mxu0 0
      %462 = vmatprep.subr.bf16.mxu0 0
      %463 = vmatpush1.bf16.msra.mxu0 0
      %464 = vmatprep.subr.bf16.mxu0 0
      %465 = vmatpush1.bf16.msra.mxu0 0
      %466 = vmatprep.subr.bf16.mxu0 0
      %467 = vmatpush1.bf16.msra.mxu0 0
      %468 = vmatprep.subr.bf16.mxu0 0
      %469 = vmatpush1.bf16.msra.mxu0 0
      %470 = vmatprep.subr.bf16.mxu0 0
      %471 = vmatpush1.bf16.msra.mxu0 0
      %472 = vmatprep.subr.bf16.mxu0 0
      %473 = vmatpush1.bf16.msra.mxu0 0
      %474 = vmatprep.subr.bf16.mxu0 0
      %475 = vmatpush1.bf16.msra.mxu0 0
      %476 = vmatprep.subr.bf16.mxu0 0
      %477 = vmatpush1.bf16.msra.mxu0 0
      %478 = vmatprep.subr.bf16.mxu0 0
      %479 = vmatpush1.bf16.msra.mxu0 0
      %480 = vmatprep.subr.bf16.mxu0 0
      %481 = vmatpush1.bf16.msra.mxu0 0
      %482 = vmatprep.subr.bf16.mxu0 0
      %483 = vmatpush1.bf16.msra.mxu0 0
      %484 = vmatprep.subr.bf16.mxu0 0
      %485 = vmatpush1.bf16.msra.mxu0 0
      %486 = vmatprep.subr.bf16.mxu0 0
      %487 = vmatpush1.bf16.msra.mxu0 0
      %488 = vmatprep.mubr.bf16.mxu0 0
      %489 = vmatmul.mubr.bf16.gmra.mrb[0].mxu0 %v404
      %v490 = vpop.f32.mrb[0].mxu0
      %v491 = vadd.f32 %v381, %v490
      %v492 = vpop.f32.mrb[0].mxu0
      %v493 = vpop.f32.mrb[0].mxu0
      %v494 = vpop.f32.mrb[0].mxu0
      %495 = vdwg.mxu0
      %v496 = vld [vmem:[%s1 + $0x8] sm:$0xf]
      %v497 = vld [vmem:[%s246] sm:$0xff]
      %v499 = vcombine.high %v497, %v497
      %v501 = vunpack.c.l.s4 1983009808
      %v502 = vunpack.c.0.s8 %v501
      %v503 = vlaneseq
      %v504 = vshrl.u32 %v503, 7
      %v505 = vsub.s32 %v502, %v504
      %v506 = vrot.slane %v497, %v505
      %v508 = vunpack.c.l.s4 1983009808
      %v509 = vunpack.c.0.s8 %v508
      %v510 = vlaneseq
      %v511 = vshrl.u32 %v510, 7
      %v512 = vsub.s32 %v509, %v511
      %v513 = vrot.slane %v499, %v512
      %v514 = vcombine.high %v506, %v506
      %v515 = vcombine.high %v513, %v513
      %516 = vrot.lane.b32.xlu0 %v506, 126
      %v517 = vpop.permute.xlu0 %516
      %518 = vrot.lane.b32.xlu0 %v514, 126
      %v519 = vpop.permute.xlu0 %518
      %520 = vrot.lane.b32.xlu0 %v513, 126
      %v521 = vpop.permute.xlu0 %520
      %522 = vrot.lane.b32.xlu0 %v515, 126
      %v523 = vpop.permute.xlu0 %522
      %vm524 = vcmask 1031168
      %v525 = vsel %vm524, %v517, %v519
      %v526 = vsel %vm524, %v519, %v521
      %v527 = vsel %vm524, %v521, %v523
      %v529 = vsel %vm291, %v496, 0
      %v532 = vsel %vm295, %v525, 0
      %v535 = vsel %vm295, %v526, 0
      %v538 = vsel %vm295, %v527, 0
      %540 = vmatprep.subr.bf16.mxu0 %v535
      %541 = vmatpush1.bf16.msra.mxu0 %v532
      %542 = vmatprep.subr.bf16.mxu0 0
      %543 = vmatpush1.bf16.msra.mxu0 0
      %544 = vmatprep.subr.bf16.mxu0 0
      %545 = vmatpush1.bf16.msra.mxu0 0
      %546 = vmatprep.subr.bf16.mxu0 0
      %547 = vmatpush1.bf16.msra.mxu0 0
      %548 = vmatprep.subr.bf16.mxu0 0
      %549 = vmatpush1.bf16.msra.mxu0 0
      %550 = vmatprep.subr.bf16.mxu0 0
      %551 = vmatpush1.bf16.msra.mxu0 0
      %552 = vmatprep.subr.bf16.mxu0 0
      %553 = vmatpush1.bf16.msra.mxu0 0
      %554 = vmatprep.subr.bf16.mxu0 0
      %555 = vmatpush1.bf16.msra.mxu0 0
      %556 = vmatprep.subr.bf16.mxu0 0
      %557 = vmatpush1.bf16.msra.mxu0 0
      %558 = vmatprep.subr.bf16.mxu0 0
      %559 = vmatpush1.bf16.msra.mxu0 0
      %560 = vmatprep.subr.bf16.mxu0 0
      %561 = vmatpush1.bf16.msra.mxu0 0
      %562 = vmatprep.subr.bf16.mxu0 0
      %563 = vmatpush1.bf16.msra.mxu0 0
      %564 = vmatprep.subr.bf16.mxu0 0
      %565 = vmatpush1.bf16.msra.mxu0 0
      %566 = vmatprep.subr.bf16.mxu0 0
      %567 = vmatpush1.bf16.msra.mxu0 0
      %568 = vmatprep.subr.bf16.mxu0 0
      %569 = vmatpush1.bf16.msra.mxu0 0
      %570 = vmatprep.subr.bf16.mxu0 0
      %571 = vmatpush1.bf16.msra.mxu0 0
      %572 = vmatprep.mubr.bf16.mxu0 0
      %573 = vmatmul.mubr.bf16.gmra.mrb[0].mxu0 %v529
      %v574 = vpop.f32.mrb[0].mxu0
      %v575 = vadd.f32 0.0, %v574
      %v576 = vpop.f32.mrb[0].mxu0
      %v577 = vadd.f32 0.0, %v576
      %v578 = vpop.f32.mrb[0].mxu0
      %v579 = vpop.f32.mrb[0].mxu0
      %580 = vdwg.mxu0
      %581 = vmatprep.subr.bf16.mxu0 0
      %582 = vmatpush1.bf16.msra.mxu0 %v538
      %583 = vmatprep.subr.bf16.mxu0 0
      %584 = vmatpush1.bf16.msra.mxu0 0
      %585 = vmatprep.subr.bf16.mxu0 0
      %586 = vmatpush1.bf16.msra.mxu0 0
      %587 = vmatprep.subr.bf16.mxu0 0
      %588 = vmatpush1.bf16.msra.mxu0 0
      %589 = vmatprep.subr.bf16.mxu0 0
      %590 = vmatpush1.bf16.msra.mxu0 0
      %591 = vmatprep.subr.bf16.mxu0 0
      %592 = vmatpush1.bf16.msra.mxu0 0
      %593 = vmatprep.subr.bf16.mxu0 0
      %594 = vmatpush1.bf16.msra.mxu0 0
      %595 = vmatprep.subr.bf16.mxu0 0
      %596 = vmatpush1.bf16.msra.mxu0 0
      %597 = vmatprep.subr.bf16.mxu0 0
      %598 = vmatpush1.bf16.msra.mxu0 0
      %599 = vmatprep.subr.bf16.mxu0 0
      %600 = vmatpush1.bf16.msra.mxu0 0
      %601 = vmatprep.subr.bf16.mxu0 0
      %602 = vmatpush1.bf16.msra.mxu0 0
      %603 = vmatprep.subr.bf16.mxu0 0
      %604 = vmatpush1.bf16.msra.mxu0 0
      %605 = vmatprep.subr.bf16.mxu0 0
      %606 = vmatpush1.bf16.msra.mxu0 0
      %607 = vmatprep.subr.bf16.mxu0 0
      %608 = vmatpush1.bf16.msra.mxu0 0
      %609 = vmatprep.subr.bf16.mxu0 0
      %610 = vmatpush1.bf16.msra.mxu0 0
      %611 = vmatprep.subr.bf16.mxu0 0
      %612 = vmatpush1.bf16.msra.mxu0 0
      %613 = vmatprep.mubr.bf16.mxu0 0
      %614 = vmatmul.mubr.bf16.gmra.mrb[0].mxu0 %v529
      %v615 = vpop.f32.mrb[0].mxu0
      %v616 = vadd.f32 0.0, %v615
      %v617 = vpop.f32.mrb[0].mxu0
      %v618 = vpop.f32.mrb[0].mxu0
      %v619 = vpop.f32.mrb[0].mxu0
      %620 = vdwg.mxu0
      %v621 = vadd.f32 %v450, %v575
      %v622 = vadd.f32 %v452, %v577
      %v623 = vadd.f32 %v491, %v616
      %v624 = vld [vmem:[%s1 + $0xc] sm:$0xf]
      %v625 = vld [vmem:[%s246] sm:$0xff]
      %v627 = vcombine.high %v625, %v625
      %v629 = vunpack.c.l.s4 1983009808
      %v630 = vunpack.c.0.s8 %v629
      %v631 = vlaneseq
      %v632 = vshrl.u32 %v631, 7
      %v633 = vsub.s32 %v630, %v632
      %v634 = vrot.slane %v625, %v633
      %v636 = vunpack.c.l.s4 1983009808
      %v637 = vunpack.c.0.s8 %v636
      %v638 = vlaneseq
      %v639 = vshrl.u32 %v638, 7
      %v640 = vsub.s32 %v637, %v639
      %v641 = vrot.slane %v627, %v640
      %v642 = vcombine.high %v634, %v634
      %v643 = vcombine.high %v641, %v641
      %644 = vrot.lane.b32.xlu0 %v634, 104
      %v645 = vpop.permute.xlu0 %644
      %646 = vrot.lane.b32.xlu0 %v642, 104
      %v647 = vpop.permute.xlu0 %646
      %648 = vrot.lane.b32.xlu0 %v641, 104
      %v649 = vpop.permute.xlu0 %648
      %650 = vrot.lane.b32.xlu0 %v643, 104
      %v651 = vpop.permute.xlu0 %650
      %vm652 = vcmask 850944
      %v653 = vsel %vm652, %v645, %v647
      %v654 = vsel %vm652, %v647, %v649
      %v655 = vsel %vm652, %v649, %v651
      %v657 = vsel %vm291, %v624, 0
      %v660 = vsel %vm295, %v653, 0
      %v663 = vsel %vm295, %v654, 0
      %v666 = vsel %vm295, %v655, 0
      %668 = vmatprep.subr.bf16.mxu0 %v663
      %669 = vmatpush1.bf16.msra.mxu0 %v660
      %670 = vmatprep.subr.bf16.mxu0 0
      %671 = vmatpush1.bf16.msra.mxu0 0
      %672 = vmatprep.subr.bf16.mxu0 0
      %673 = vmatpush1.bf16.msra.mxu0 0
      %674 = vmatprep.subr.bf16.mxu0 0
      %675 = vmatpush1.bf16.msra.mxu0 0
      %676 = vmatprep.subr.bf16.mxu0 0
      %677 = vmatpush1.bf16.msra.mxu0 0
      %678 = vmatprep.subr.bf16.mxu0 0
      %679 = vmatpush1.bf16.msra.mxu0 0
      %680 = vmatprep.subr.bf16.mxu0 0
      %681 = vmatpush1.bf16.msra.mxu0 0
      %682 = vmatprep.subr.bf16.mxu0 0
      %683 = vmatpush1.bf16.msra.mxu0 0
      %684 = vmatprep.subr.bf16.mxu0 0
      %685 = vmatpush1.bf16.msra.mxu0 0
      %686 = vmatprep.subr.bf16.mxu0 0
      %687 = vmatpush1.bf16.msra.mxu0 0
      %688 = vmatprep.subr.bf16.mxu0 0
      %689 = vmatpush1.bf16.msra.mxu0 0
      %690 = vmatprep.subr.bf16.mxu0 0
      %691 = vmatpush1.bf16.msra.mxu0 0
      %692 = vmatprep.subr.bf16.mxu0 0
      %693 = vmatpush1.bf16.msra.mxu0 0
      %694 = vmatprep.subr.bf16.mxu0 0
      %695 = vmatpush1.bf16.msra.mxu0 0
      %696 = vmatprep.subr.bf16.mxu0 0
      %697 = vmatpush1.bf16.msra.mxu0 0
      %698 = vmatprep.subr.bf16.mxu0 0
      %699 = vmatpush1.bf16.msra.mxu0 0
      %700 = vmatprep.mubr.bf16.mxu0 0
      %701 = vmatmul.mubr.bf16.gmra.mrb[0].mxu0 %v657
      %v702 = vpop.f32.mrb[0].mxu0
      %v703 = vadd.f32 0.0, %v702
      %v704 = vpop.f32.mrb[0].mxu0
      %v705 = vadd.f32 0.0, %v704
      %v706 = vpop.f32.mrb[0].mxu0
      %v707 = vpop.f32.mrb[0].mxu0
      %708 = vdwg.mxu0
      %709 = vmatprep.subr.bf16.mxu0 0
      %710 = vmatpush1.bf16.msra.mxu0 %v666
      %711 = vmatprep.subr.bf16.mxu0 0
      %712 = vmatpush1.bf16.msra.mxu0 0
      %713 = vmatprep.subr.bf16.mxu0 0
      %714 = vmatpush1.bf16.msra.mxu0 0
      %715 = vmatprep.subr.bf16.mxu0 0
      %716 = vmatpush1.bf16.msra.mxu0 0
      %717 = vmatprep.subr.bf16.mxu0 0
      %718 = vmatpush1.bf16.msra.mxu0 0
      %719 = vmatprep.subr.bf16.mxu0 0
      %720 = vmatpush1.bf16.msra.mxu0 0
      %721 = vmatprep.subr.bf16.mxu0 0
      %722 = vmatpush1.bf16.msra.mxu0 0
      %723 = vmatprep.subr.bf16.mxu0 0
      %724 = vmatpush1.bf16.msra.mxu0 0
      %725 = vmatprep.subr.bf16.mxu0 0
      %726 = vmatpush1.bf16.msra.mxu0 0
      %727 = vmatprep.subr.bf16.mxu0 0
      %728 = vmatpush1.bf16.msra.mxu0 0
      %729 = vmatprep.subr.bf16.mxu0 0
      %730 = vmatpush1.bf16.msra.mxu0 0
      %731 = vmatprep.subr.bf16.mxu0 0
      %732 = vmatpush1.bf16.msra.mxu0 0
      %733 = vmatprep.subr.bf16.mxu0 0
      %734 = vmatpush1.bf16.msra.mxu0 0
      %735 = vmatprep.subr.bf16.mxu0 0
      %736 = vmatpush1.bf16.msra.mxu0 0
      %737 = vmatprep.subr.bf16.mxu0 0
      %738 = vmatpush1.bf16.msra.mxu0 0
      %739 = vmatprep.subr.bf16.mxu0 0
      %740 = vmatpush1.bf16.msra.mxu0 0
      %741 = vmatprep.mubr.bf16.mxu0 0
      %742 = vmatmul.mubr.bf16.gmra.mrb[0].mxu0 %v657
      %v743 = vpop.f32.mrb[0].mxu0
      %v744 = vadd.f32 0.0, %v743
      %v745 = vpop.f32.mrb[0].mxu0
      %v746 = vpop.f32.mrb[0].mxu0
      %v747 = vpop.f32.mrb[0].mxu0
      %748 = vdwg.mxu0
      %v749 = vadd.f32 %v621, %v703
      %v750 = vadd.f32 %v622, %v705
      %v751 = vadd.f32 %v623, %v744
      %v752 = vld [vmem:[%s1 + $0x10] sm:$0xf]
      %v753 = vld [vmem:[%s246] sm:$0xff]
      %v755 = vcombine.high %v753, %v753
      %v757 = vunpack.c.l.s4 1983009808
      %v758 = vunpack.c.0.s8 %v757
      %v759 = vlaneseq
      %v760 = vshrl.u32 %v759, 7
      %v761 = vsub.s32 %v758, %v760
      %v762 = vrot.slane %v753, %v761
      %v764 = vunpack.c.l.s4 1983009808
      %v765 = vunpack.c.0.s8 %v764
      %v766 = vlaneseq
      %v767 = vshrl.u32 %v766, 7
      %v768 = vsub.s32 %v765, %v767
      %v769 = vrot.slane %v755, %v768
      %v770 = vcombine.high %v762, %v762
      %v771 = vcombine.high %v769, %v769
      %772 = vrot.lane.b32.xlu0 %v762, 103
      %v773 = vpop.permute.xlu0 %772
      %774 = vrot.lane.b32.xlu0 %v770, 103
      %v775 = vpop.permute.xlu0 %774
      %776 = vrot.lane.b32.xlu0 %v769, 103
      %v777 = vpop.permute.xlu0 %776
      %778 = vrot.lane.b32.xlu0 %v771, 103
      %v779 = vpop.permute.xlu0 %778
      %vm780 = vcmask 842752
      %v781 = vsel %vm780, %v773, %v775
      %v782 = vsel %vm780, %v775, %v777
      %v783 = vsel %vm780, %v777, %v779
      %v785 = vsel %vm291, %v752, 0
      %v788 = vsel %vm295, %v781, 0
      %v791 = vsel %vm295, %v782, 0
      %v794 = vsel %vm295, %v783, 0
      %796 = vmatprep.subr.bf16.mxu0 %v791
      %797 = vmatpush1.bf16.msra.mxu0 %v788
      %798 = vmatprep.subr.bf16.mxu0 0
      %799 = vmatpush1.bf16.msra.mxu0 0
      %800 = vmatprep.subr.bf16.mxu0 0
      %801 = vmatpush1.bf16.msra.mxu0 0
      %802 = vmatprep.subr.bf16.mxu0 0
      %803 = vmatpush1.bf16.msra.mxu0 0
      %804 = vmatprep.subr.bf16.mxu0 0
      %805 = vmatpush1.bf16.msra.mxu0 0
      %806 = vmatprep.subr.bf16.mxu0 0
      %807 = vmatpush1.bf16.msra.mxu0 0
      %808 = vmatprep.subr.bf16.mxu0 0
      %809 = vmatpush1.bf16.msra.mxu0 0
      %810 = vmatprep.subr.bf16.mxu0 0
      %811 = vmatpush1.bf16.msra.mxu0 0
      %812 = vmatprep.subr.bf16.mxu0 0
      %813 = vmatpush1.bf16.msra.mxu0 0
      %814 = vmatprep.subr.bf16.mxu0 0
      %815 = vmatpush1.bf16.msra.mxu0 0
      %816 = vmatprep.subr.bf16.mxu0 0
      %817 = vmatpush1.bf16.msra.mxu0 0
      %818 = vmatprep.subr.bf16.mxu0 0
      %819 = vmatpush1.bf16.msra.mxu0 0
      %820 = vmatprep.subr.bf16.mxu0 0
      %821 = vmatpush1.bf16.msra.mxu0 0
      %822 = vmatprep.subr.bf16.mxu0 0
      %823 = vmatpush1.bf16.msra.mxu0 0
      %824 = vmatprep.subr.bf16.mxu0 0
      %825 = vmatpush1.bf16.msra.mxu0 0
      %826 = vmatprep.subr.bf16.mxu0 0
      %827 = vmatpush1.bf16.msra.mxu0 0
      %828 = vmatprep.mubr.bf16.mxu0 0
      %829 = vmatmul.mubr.bf16.gmra.mrb[0].mxu0 %v785
      %v830 = vpop.f32.mrb[0].mxu0
      %v831 = vadd.f32 0.0, %v830
      %v832 = vpop.f32.mrb[0].mxu0
      %v833 = vadd.f32 0.0, %v832
      %v834 = vpop.f32.mrb[0].mxu0
      %v835 = vpop.f32.mrb[0].mxu0
      %836 = vdwg.mxu0
      %837 = vmatprep.subr.bf16.mxu0 0
      %838 = vmatpush1.bf16.msra.mxu0 %v794
      %839 = vmatprep.subr.bf16.mxu0 0
      %840 = vmatpush1.bf16.msra.mxu0 0
      %841 = vmatprep.subr.bf16.mxu0 0
      %842 = vmatpush1.bf16.msra.mxu0 0
      %843 = vmatprep.subr.bf16.mxu0 0
      %844 = vmatpush1.bf16.msra.mxu0 0
      %845 = vmatprep.subr.bf16.mxu0 0
      %846 = vmatpush1.bf16.msra.mxu0 0
      %847 = vmatprep.subr.bf16.mxu0 0
      %848 = vmatpush1.bf16.msra.mxu0 0
      %849 = vmatprep.subr.bf16.mxu0 0
      %850 = vmatpush1.bf16.msra.mxu0 0
      %851 = vmatprep.subr.bf16.mxu0 0
      %852 = vmatpush1.bf16.msra.mxu0 0
      %853 = vmatprep.subr.bf16.mxu0 0
      %854 = vmatpush1.bf16.msra.mxu0 0
      %855 = vmatprep.subr.bf16.mxu0 0
      %856 = vmatpush1.bf16.msra.mxu0 0
      %857 = vmatprep.subr.bf16.mxu0 0
      %858 = vmatpush1.bf16.msra.mxu0 0
      %859 = vmatprep.subr.bf16.mxu0 0
      %860 = vmatpush1.bf16.msra.mxu0 0
      %861 = vmatprep.subr.bf16.mxu0 0
      %862 = vmatpush1.bf16.msra.mxu0 0
      %863 = vmatprep.subr.bf16.mxu0 0
      %864 = vmatpush1.bf16.msra.mxu0 0
      %865 = vmatprep.subr.bf16.mxu0 0
      %866 = vmatpush1.bf16.msra.mxu0 0
      %867 = vmatprep.subr.bf16.mxu0 0
      %868 = vmatpush1.bf16.msra.mxu0 0
      %869 = vmatprep.mubr.bf16.mxu0 0
      %870 = vmatmul.mubr.bf16.gmra.mrb[0].mxu0 %v785
      %v871 = vpop.f32.mrb[0].mxu0
      %v872 = vadd.f32 0.0, %v871
      %v873 = vpop.f32.mrb[0].mxu0
      %v874 = vpop.f32.mrb[0].mxu0
      %v875 = vpop.f32.mrb[0].mxu0
      %876 = vdwg.mxu0
      %v877 = vadd.f32 %v749, %v831
      %v878 = vadd.f32 %v750, %v833
      %v879 = vadd.f32 %v751, %v872
      %v880 = vld [vmem:[%s1 + $0x14] sm:$0xf]
      %v881 = vld [vmem:[%s246] sm:$0xff]
      %v883 = vcombine.high %v881, %v881
      %v885 = vunpack.c.l.s4 1983009808
      %v886 = vunpack.c.0.s8 %v885
      %v887 = vlaneseq
      %v888 = vshrl.u32 %v887, 7
      %v889 = vsub.s32 %v886, %v888
      %v890 = vrot.slane %v881, %v889
      %v892 = vunpack.c.l.s4 1983009808
      %v893 = vunpack.c.0.s8 %v892
      %v894 = vlaneseq
      %v895 = vshrl.u32 %v894, 7
      %v896 = vsub.s32 %v893, %v895
      %v897 = vrot.slane %v883, %v896
      %v898 = vcombine.high %v890, %v890
      %v899 = vcombine.high %v897, %v897
      %900 = vrot.lane.b32.xlu0 %v890, 102
      %v901 = vpop.permute.xlu0 %900
      %902 = vrot.lane.b32.xlu0 %v898, 102
      %v903 = vpop.permute.xlu0 %902
      %904 = vrot.lane.b32.xlu0 %v897, 102
      %v905 = vpop.permute.xlu0 %904
      %906 = vrot.lane.b32.xlu0 %v899, 102
      %v907 = vpop.permute.xlu0 %906
      %vm908 = vcmask 834560
      %v909 = vsel %vm908, %v901, %v903
      %v910 = vsel %vm908, %v903, %v905
      %v911 = vsel %vm908, %v905, %v907
      %v913 = vsel %vm291, %v880, 0
      %v916 = vsel %vm295, %v909, 0
      %v919 = vsel %vm295, %v910, 0
      %v922 = vsel %vm295, %v911, 0
      %924 = vmatprep.subr.bf16.mxu0 %v919
      %925 = vmatpush1.bf16.msra.mxu0 %v916
      %926 = vmatprep.subr.bf16.mxu0 0
      %927 = vmatpush1.bf16.msra.mxu0 0
      %928 = vmatprep.subr.bf16.mxu0 0
      %929 = vmatpush1.bf16.msra.mxu0 0
      %930 = vmatprep.subr.bf16.mxu0 0
      %931 = vmatpush1.bf16.msra.mxu0 0
      %932 = vmatprep.subr.bf16.mxu0 0
      %933 = vmatpush1.bf16.msra.mxu0 0
      %934 = vmatprep.subr.bf16.mxu0 0
      %935 = vmatpush1.bf16.msra.mxu0 0
      %936 = vmatprep.subr.bf16.mxu0 0
      %937 = vmatpush1.bf16.msra.mxu0 0
      %938 = vmatprep.subr.bf16.mxu0 0
      %939 = vmatpush1.bf16.msra.mxu0 0
      %940 = vmatprep.subr.bf16.mxu0 0
      %941 = vmatpush1.bf16.msra.mxu0 0
      %942 = vmatprep.subr.bf16.mxu0 0
      %943 = vmatpush1.bf16.msra.mxu0 0
      %944 = vmatprep.subr.bf16.mxu0 0
      %945 = vmatpush1.bf16.msra.mxu0 0
      %946 = vmatprep.subr.bf16.mxu0 0
      %947 = vmatpush1.bf16.msra.mxu0 0
      %948 = vmatprep.subr.bf16.mxu0 0
      %949 = vmatpush1.bf16.msra.mxu0 0
      %950 = vmatprep.subr.bf16.mxu0 0
      %951 = vmatpush1.bf16.msra.mxu0 0
      %952 = vmatprep.subr.bf16.mxu0 0
      %953 = vmatpush1.bf16.msra.mxu0 0
      %954 = vmatprep.subr.bf16.mxu0 0
      %955 = vmatpush1.bf16.msra.mxu0 0
      %956 = vmatprep.mubr.bf16.mxu0 0
      %957 = vmatmul.mubr.bf16.gmra.mrb[0].mxu0 %v913
      %v958 = vpop.f32.mrb[0].mxu0
      %v959 = vadd.f32 0.0, %v958
      %v960 = vpop.f32.mrb[0].mxu0
      %v961 = vadd.f32 0.0, %v960
      %v962 = vpop.f32.mrb[0].mxu0
      %v963 = vpop.f32.mrb[0].mxu0
      %964 = vdwg.mxu0
      %965 = vmatprep.subr.bf16.mxu0 0
      %966 = vmatpush1.bf16.msra.mxu0 %v922
      %967 = vmatprep.subr.bf16.mxu0 0
      %968 = vmatpush1.bf16.msra.mxu0 0
      %969 = vmatprep.subr.bf16.mxu0 0
      %970 = vmatpush1.bf16.msra.mxu0 0
      %971 = vmatprep.subr.bf16.mxu0 0
      %972 = vmatpush1.bf16.msra.mxu0 0
      %973 = vmatprep.subr.bf16.mxu0 0
      %974 = vmatpush1.bf16.msra.mxu0 0
      %975 = vmatprep.subr.bf16.mxu0 0
      %976 = vmatpush1.bf16.msra.mxu0 0
      %977 = vmatprep.subr.bf16.mxu0 0
      %978 = vmatpush1.bf16.msra.mxu0 0
      %979 = vmatprep.subr.bf16.mxu0 0
      %980 = vmatpush1.bf16.msra.mxu0 0
      %981 = vmatprep.subr.bf16.mxu0 0
      %982 = vmatpush1.bf16.msra.mxu0 0
      %983 = vmatprep.subr.bf16.mxu0 0
      %984 = vmatpush1.bf16.msra.mxu0 0
      %985 = vmatprep.subr.bf16.mxu0 0
      %986 = vmatpush1.bf16.msra.mxu0 0
      %987 = vmatprep.subr.bf16.mxu0 0
      %988 = vmatpush1.bf16.msra.mxu0 0
      %989 = vmatprep.subr.bf16.mxu0 0
      %990 = vmatpush1.bf16.msra.mxu0 0
      %991 = vmatprep.subr.bf16.mxu0 0
      %992 = vmatpush1.bf16.msra.mxu0 0
      %993 = vmatprep.subr.bf16.mxu0 0
      %994 = vmatpush1.bf16.msra.mxu0 0
      %995 = vmatprep.subr.bf16.mxu0 0
      %996 = vmatpush1.bf16.msra.mxu0 0
      %997 = vmatprep.mubr.bf16.mxu0 0
      %998 = vmatmul.mubr.bf16.gmra.mrb[0].mxu0 %v913
      %v999 = vpop.f32.mrb[0].mxu0
      %v1000 = vadd.f32 0.0, %v999
      %v1001 = vpop.f32.mrb[0].mxu0
      %v1002 = vpop.f32.mrb[0].mxu0
      %v1003 = vpop.f32.mrb[0].mxu0
      %1004 = vdwg.mxu0
      %v1005 = vadd.f32 %v877, %v959
      %v1006 = vadd.f32 %v878, %v961
      %v1007 = vadd.f32 %v879, %v1000
      %v1008 = vld [vmem:[%s1 + $0x18] sm:$0xf]
      %v1009 = vld [vmem:[%s246] sm:$0xff]
      %v1011 = vcombine.high %v1009, %v1009
      %v1013 = vunpack.c.l.s4 1983009808
      %v1014 = vunpack.c.0.s8 %v1013
      %v1015 = vlaneseq
      %v1016 = vshrl.u32 %v1015, 7
      %v1017 = vsub.s32 %v1014, %v1016
      %v1018 = vrot.slane %v1009, %v1017
      %v1020 = vunpack.c.l.s4 1983009808
      %v1021 = vunpack.c.0.s8 %v1020
      %v1022 = vlaneseq
      %v1023 = vshrl.u32 %v1022, 7
      %v1024 = vsub.s32 %v1021, %v1023
      %v1025 = vrot.slane %v1011, %v1024
      %v1026 = vcombine.high %v1018, %v1018
      %v1027 = vcombine.high %v1025, %v1025
      %1028 = vrot.lane.b32.xlu0 %v1018, 80
      %v1029 = vpop.permute.xlu0 %1028
      %1030 = vrot.lane.b32.xlu0 %v1026, 80
      %v1031 = vpop.permute.xlu0 %1030
      %1032 = vrot.lane.b32.xlu0 %v1025, 80
      %v1033 = vpop.permute.xlu0 %1032
      %1034 = vrot.lane.b32.xlu0 %v1027, 80
      %v1035 = vpop.permute.xlu0 %1034
      %vm1036 = vcmask 654336
      %v1037 = vsel %vm1036, %v1029, %v1031
      %v1038 = vsel %vm1036, %v1031, %v1033
      %v1039 = vsel %vm1036, %v1033, %v1035
      %v1041 = vsel %vm291, %v1008, 0
      %v1044 = vsel %vm295, %v1037, 0
      %v1047 = vsel %vm295, %v1038, 0
      %v1050 = vsel %vm295, %v1039, 0
      %1052 = vmatprep.subr.bf16.mxu0 %v1047
      %1053 = vmatpush1.bf16.msra.mxu0 %v1044
      %1054 = vmatprep.subr.bf16.mxu0 0
      %1055 = vmatpush1.bf16.msra.mxu0 0
      %1056 = vmatprep.subr.bf16.mxu0 0
      %1057 = vmatpush1.bf16.msra.mxu0 0
      %1058 = vmatprep.subr.bf16.mxu0 0
      %1059 = vmatpush1.bf16.msra.mxu0 0
      %1060 = vmatprep.subr.bf16.mxu0 0
      %1061 = vmatpush1.bf16.msra.mxu0 0
      %1062 = vmatprep.subr.bf16.mxu0 0
      %1063 = vmatpush1.bf16.msra.mxu0 0
      %1064 = vmatprep.subr.bf16.mxu0 0
      %1065 = vmatpush1.bf16.msra.mxu0 0
      %1066 = vmatprep.subr.bf16.mxu0 0
      %1067 = vmatpush1.bf16.msra.mxu0 0
      %1068 = vmatprep.subr.bf16.mxu0 0
      %1069 = vmatpush1.bf16.msra.mxu0 0
      %1070 = vmatprep.subr.bf16.mxu0 0
      %1071 = vmatpush1.bf16.msra.mxu0 0
      %1072 = vmatprep.subr.bf16.mxu0 0
      %1073 = vmatpush1.bf16.msra.mxu0 0
      %1074 = vmatprep.subr.bf16.mxu0 0
      %1075 = vmatpush1.bf16.msra.mxu0 0
      %1076 = vmatprep.subr.bf16.mxu0 0
      %1077 = vmatpush1.bf16.msra.mxu0 0
      %1078 = vmatprep.subr.bf16.mxu0 0
      %1079 = vmatpush1.bf16.msra.mxu0 0
      %1080 = vmatprep.subr.bf16.mxu0 0
      %1081 = vmatpush1.bf16.msra.mxu0 0
      %1082 = vmatprep.subr.bf16.mxu0 0
      %1083 = vmatpush1.bf16.msra.mxu0 0
      %1084 = vmatprep.mubr.bf16.mxu0 0
      %1085 = vmatmul.mubr.bf16.gmra.mrb[0].mxu0 %v1041
      %v1086 = vpop.f32.mrb[0].mxu0
      %v1087 = vadd.f32 0.0, %v1086
      %v1088 = vpop.f32.mrb[0].mxu0
      %v1089 = vadd.f32 0.0, %v1088
      %v1090 = vpop.f32.mrb[0].mxu0
      %v1091 = vpop.f32.mrb[0].mxu0
      %1092 = vdwg.mxu0
      %1093 = vmatprep.subr.bf16.mxu0 0
      %1094 = vmatpush1.bf16.msra.mxu0 %v1050
      %1095 = vmatprep.subr.bf16.mxu0 0
      %1096 = vmatpush1.bf16.msra.mxu0 0
      %1097 = vmatprep.subr.bf16.mxu0 0
      %1098 = vmatpush1.bf16.msra.mxu0 0
      %1099 = vmatprep.subr.bf16.mxu0 0
      %1100 = vmatpush1.bf16.msra.mxu0 0
      %1101 = vmatprep.subr.bf16.mxu0 0
      %1102 = vmatpush1.bf16.msra.mxu0 0
      %1103 = vmatprep.subr.bf16.mxu0 0
      %1104 = vmatpush1.bf16.msra.mxu0 0
      %1105 = vmatprep.subr.bf16.mxu0 0
      %1106 = vmatpush1.bf16.msra.mxu0 0
      %1107 = vmatprep.subr.bf16.mxu0 0
      %1108 = vmatpush1.bf16.msra.mxu0 0
      %1109 = vmatprep.subr.bf16.mxu0 0
      %1110 = vmatpush1.bf16.msra.mxu0 0
      %1111 = vmatprep.subr.bf16.mxu0 0
      %1112 = vmatpush1.bf16.msra.mxu0 0
      %1113 = vmatprep.subr.bf16.mxu0 0
      %1114 = vmatpush1.bf16.msra.mxu0 0
      %1115 = vmatprep.subr.bf16.mxu0 0
      %1116 = vmatpush1.bf16.msra.mxu0 0
      %1117 = vmatprep.subr.bf16.mxu0 0
      %1118 = vmatpush1.bf16.msra.mxu0 0
      %1119 = vmatprep.subr.bf16.mxu0 0
      %1120 = vmatpush1.bf16.msra.mxu0 0
      %1121 = vmatprep.subr.bf16.mxu0 0
      %1122 = vmatpush1.bf16.msra.mxu0 0
      %1123 = vmatprep.subr.bf16.mxu0 0
      %1124 = vmatpush1.bf16.msra.mxu0 0
      %1125 = vmatprep.mubr.bf16.mxu0 0
      %1126 = vmatmul.mubr.bf16.gmra.mrb[0].mxu0 %v1041
      %v1127 = vpop.f32.mrb[0].mxu0
      %v1128 = vadd.f32 0.0, %v1127
      %v1129 = vpop.f32.mrb[0].mxu0
      %v1130 = vpop.f32.mrb[0].mxu0
      %v1131 = vpop.f32.mrb[0].mxu0
      %1132 = vdwg.mxu0
      %v1133 = vadd.f32 %v1005, %v1087
      %v1134 = vadd.f32 %v1006, %v1089
      %v1135 = vadd.f32 %v1007, %v1128
      %v1136 = vld [vmem:[%s1 + $0x1c] sm:$0xf]
      %v1137 = vld [vmem:[%s246] sm:$0xff]
      %v1139 = vcombine.high %v1137, %v1137
      %v1141 = vunpack.c.l.s4 1983009808
      %v1142 = vunpack.c.0.s8 %v1141
      %v1143 = vlaneseq
      %v1144 = vshrl.u32 %v1143, 7
      %v1145 = vsub.s32 %v1142, %v1144
      %v1146 = vrot.slane %v1137, %v1145
      %v1148 = vunpack.c.l.s4 1983009808
      %v1149 = vunpack.c.0.s8 %v1148
      %v1150 = vlaneseq
      %v1151 = vshrl.u32 %v1150, 7
      %v1152 = vsub.s32 %v1149, %v1151
      %v1153 = vrot.slane %v1139, %v1152
      %v1154 = vcombine.high %v1146, %v1146
      %v1155 = vcombine.high %v1153, %v1153
      %1156 = vrot.lane.b32.xlu0 %v1146, 79
      %v1157 = vpop.permute.xlu0 %1156
      %1158 = vrot.lane.b32.xlu0 %v1154, 79
      %v1159 = vpop.permute.xlu0 %1158
      %1160 = vrot.lane.b32.xlu0 %v1153, 79
      %v1161 = vpop.permute.xlu0 %1160
      %1162 = vrot.lane.b32.xlu0 %v1155, 79
      %v1163 = vpop.permute.xlu0 %1162
      %vm1164 = vcmask 646144
      %v1165 = vsel %vm1164, %v1157, %v1159
      %v1166 = vsel %vm1164, %v1159, %v1161
      %v1167 = vsel %vm1164, %v1161, %v1163
      %v1169 = vsel %vm291, %v1136, 0
      %v1172 = vsel %vm295, %v1165, 0
      %v1175 = vsel %vm295, %v1166, 0
      %v1178 = vsel %vm295, %v1167, 0
      %1180 = vmatprep.subr.bf16.mxu0 %v1175
      %1181 = vmatpush1.bf16.msra.mxu0 %v1172
      %1182 = vmatprep.subr.bf16.mxu0 0
      %1183 = vmatpush1.bf16.msra.mxu0 0
      %1184 = vmatprep.subr.bf16.mxu0 0
      %1185 = vmatpush1.bf16.msra.mxu0 0
      %1186 = vmatprep.subr.bf16.mxu0 0
      %1187 = vmatpush1.bf16.msra.mxu0 0
      %1188 = vmatprep.subr.bf16.mxu0 0
      %1189 = vmatpush1.bf16.msra.mxu0 0
      %1190 = vmatprep.subr.bf16.mxu0 0
      %1191 = vmatpush1.bf16.msra.mxu0 0
      %1192 = vmatprep.subr.bf16.mxu0 0
      %1193 = vmatpush1.bf16.msra.mxu0 0
      %1194 = vmatprep.subr.bf16.mxu0 0
      %1195 = vmatpush1.bf16.msra.mxu0 0
      %1196 = vmatprep.subr.bf16.mxu0 0
      %1197 = vmatpush1.bf16.msra.mxu0 0
      %1198 = vmatprep.subr.bf16.mxu0 0
      %1199 = vmatpush1.bf16.msra.mxu0 0
      %1200 = vmatprep.subr.bf16.mxu0 0
      %1201 = vmatpush1.bf16.msra.mxu0 0
      %1202 = vmatprep.subr.bf16.mxu0 0
      %1203 = vmatpush1.bf16.msra.mxu0 0
      %1204 = vmatprep.subr.bf16.mxu0 0
      %1205 = vmatpush1.bf16.msra.mxu0 0
      %1206 = vmatprep.subr.bf16.mxu0 0
      %1207 = vmatpush1.bf16.msra.mxu0 0
      %1208 = vmatprep.subr.bf16.mxu0 0
      %1209 = vmatpush1.bf16.msra.mxu0 0
      %1210 = vmatprep.subr.bf16.mxu0 0
      %1211 = vmatpush1.bf16.msra.mxu0 0
      %1212 = vmatprep.mubr.bf16.mxu0 0
      %1213 = vmatmul.mubr.bf16.gmra.mrb[0].mxu0 %v1169
      %v1214 = vpop.f32.mrb[0].mxu0
      %v1215 = vadd.f32 0.0, %v1214
      %v1216 = vpop.f32.mrb[0].mxu0
      %v1217 = vadd.f32 0.0, %v1216
      %v1218 = vpop.f32.mrb[0].mxu0
      %v1219 = vpop.f32.mrb[0].mxu0
      %1220 = vdwg.mxu0
      %1221 = vmatprep.subr.bf16.mxu0 0
      %1222 = vmatpush1.bf16.msra.mxu0 %v1178
      %1223 = vmatprep.subr.bf16.mxu0 0
      %1224 = vmatpush1.bf16.msra.mxu0 0
      %1225 = vmatprep.subr.bf16.mxu0 0
      %1226 = vmatpush1.bf16.msra.mxu0 0
      %1227 = vmatprep.subr.bf16.mxu0 0
      %1228 = vmatpush1.bf16.msra.mxu0 0
      %1229 = vmatprep.subr.bf16.mxu0 0
      %1230 = vmatpush1.bf16.msra.mxu0 0
      %1231 = vmatprep.subr.bf16.mxu0 0
      %1232 = vmatpush1.bf16.msra.mxu0 0
      %1233 = vmatprep.subr.bf16.mxu0 0
      %1234 = vmatpush1.bf16.msra.mxu0 0
      %1235 = vmatprep.subr.bf16.mxu0 0
      %1236 = vmatpush1.bf16.msra.mxu0 0
      %1237 = vmatprep.subr.bf16.mxu0 0
      %1238 = vmatpush1.bf16.msra.mxu0 0
      %1239 = vmatprep.subr.bf16.mxu0 0
      %1240 = vmatpush1.bf16.msra.mxu0 0
      %1241 = vmatprep.subr.bf16.mxu0 0
      %1242 = vmatpush1.bf16.msra.mxu0 0
      %1243 = vmatprep.subr.bf16.mxu0 0
      %1244 = vmatpush1.bf16.msra.mxu0 0
      %1245 = vmatprep.subr.bf16.mxu0 0
      %1246 = vmatpush1.bf16.msra.mxu0 0
      %1247 = vmatprep.subr.bf16.mxu0 0
      %1248 = vmatpush1.bf16.msra.mxu0 0
      %1249 = vmatprep.subr.bf16.mxu0 0
      %1250 = vmatpush1.bf16.msra.mxu0 0
      %1251 = vmatprep.subr.bf16.mxu0 0
      %1252 = vmatpush1.bf16.msra.mxu0 0
      %1253 = vmatprep.mubr.bf16.mxu0 0
      %1254 = vmatmul.mubr.bf16.gmra.mrb[0].mxu0 %v1169
      %v1255 = vpop.f32.mrb[0].mxu0
      %v1256 = vadd.f32 0.0, %v1255
      %v1257 = vpop.f32.mrb[0].mxu0
      %v1258 = vpop.f32.mrb[0].mxu0
      %v1259 = vpop.f32.mrb[0].mxu0
      %1260 = vdwg.mxu0
      %v1261 = vadd.f32 %v1133, %v1215
      %v1262 = vadd.f32 %v1134, %v1217
      %v1263 = vadd.f32 %v1135, %v1256
      %v1264 = vld [vmem:[%s1 + $0x20] sm:$0xf]
      %v1265 = vld [vmem:[%s246] sm:$0xff]
      %v1267 = vcombine.high %v1265, %v1265
      %v1269 = vunpack.c.l.s4 1983009808
      %v1270 = vunpack.c.0.s8 %v1269
      %v1271 = vlaneseq
      %v1272 = vshrl.u32 %v1271, 7
      %v1273 = vsub.s32 %v1270, %v1272
      %v1274 = vrot.slane %v1265, %v1273
      %v1276 = vunpack.c.l.s4 1983009808
      %v1277 = vunpack.c.0.s8 %v1276
      %v1278 = vlaneseq
      %v1279 = vshrl.u32 %v1278, 7
      %v1280 = vsub.s32 %v1277, %v1279
      %v1281 = vrot.slane %v1267, %v1280
      %v1282 = vcombine.high %v1274, %v1274
      %v1283 = vcombine.high %v1281, %v1281
      %1284 = vrot.lane.b32.xlu0 %v1274, 78
      %v1285 = vpop.permute.xlu0 %1284
      %1286 = vrot.lane.b32.xlu0 %v1282, 78
      %v1287 = vpop.permute.xlu0 %1286
      %1288 = vrot.lane.b32.xlu0 %v1281, 78
      %v1289 = vpop.permute.xlu0 %1288
      %1290 = vrot.lane.b32.xlu0 %v1283, 78
      %v1291 = vpop.permute.xlu0 %1290
      %vm1292 = vcmask 637952
      %v1293 = vsel %vm1292, %v1285, %v1287
      %v1294 = vsel %vm1292, %v1287, %v1289
      %v1295 = vsel %vm1292, %v1289, %v1291
      %v1297 = vsel %vm291, %v1264, 0
      %v1300 = vsel %vm295, %v1293, 0
      %v1303 = vsel %vm295, %v1294, 0
      %v1306 = vsel %vm295, %v1295, 0
      %1308 = vmatprep.subr.bf16.mxu0 %v1303
      %1309 = vmatpush1.bf16.msra.mxu0 %v1300
      %1310 = vmatprep.subr.bf16.mxu0 0
      %1311 = vmatpush1.bf16.msra.mxu0 0
      %1312 = vmatprep.subr.bf16.mxu0 0
      %1313 = vmatpush1.bf16.msra.mxu0 0
      %1314 = vmatprep.subr.bf16.mxu0 0
      %1315 = vmatpush1.bf16.msra.mxu0 0
      %1316 = vmatprep.subr.bf16.mxu0 0
      %1317 = vmatpush1.bf16.msra.mxu0 0
      %1318 = vmatprep.subr.bf16.mxu0 0
      %1319 = vmatpush1.bf16.msra.mxu0 0
      %1320 = vmatprep.subr.bf16.mxu0 0
      %1321 = vmatpush1.bf16.msra.mxu0 0
      %1322 = vmatprep.subr.bf16.mxu0 0
      %1323 = vmatpush1.bf16.msra.mxu0 0
      %1324 = vmatprep.subr.bf16.mxu0 0
      %1325 = vmatpush1.bf16.msra.mxu0 0
      %1326 = vmatprep.subr.bf16.mxu0 0
      %1327 = vmatpush1.bf16.msra.mxu0 0
      %1328 = vmatprep.subr.bf16.mxu0 0
      %1329 = vmatpush1.bf16.msra.mxu0 0
      %1330 = vmatprep.subr.bf16.mxu0 0
      %1331 = vmatpush1.bf16.msra.mxu0 0
      %1332 = vmatprep.subr.bf16.mxu0 0
      %1333 = vmatpush1.bf16.msra.mxu0 0
      %1334 = vmatprep.subr.bf16.mxu0 0
      %1335 = vmatpush1.bf16.msra.mxu0 0
      %1336 = vmatprep.subr.bf16.mxu0 0
      %1337 = vmatpush1.bf16.msra.mxu0 0
      %1338 = vmatprep.subr.bf16.mxu0 0
      %1339 = vmatpush1.bf16.msra.mxu0 0
      %1340 = vmatprep.mubr.bf16.mxu0 0
      %1341 = vmatmul.mubr.bf16.gmra.mrb[0].mxu0 %v1297
      %v1342 = vpop.f32.mrb[0].mxu0
      %v1343 = vadd.f32 0.0, %v1342
      %v1344 = vpop.f32.mrb[0].mxu0
      %v1345 = vadd.f32 0.0, %v1344
      %v1346 = vpop.f32.mrb[0].mxu0
      %v1347 = vpop.f32.mrb[0].mxu0
      %1348 = vdwg.mxu0
      %1349 = vmatprep.subr.bf16.mxu0 0
      %1350 = vmatpush1.bf16.msra.mxu0 %v1306
      %1351 = vmatprep.subr.bf16.mxu0 0
      %1352 = vmatpush1.bf16.msra.mxu0 0
      %1353 = vmatprep.subr.bf16.mxu0 0
      %1354 = vmatpush1.bf16.msra.mxu0 0
      %1355 = vmatprep.subr.bf16.mxu0 0
      %1356 = vmatpush1.bf16.msra.mxu0 0
      %1357 = vmatprep.subr.bf16.mxu0 0
      %1358 = vmatpush1.bf16.msra.mxu0 0
      %1359 = vmatprep.subr.bf16.mxu0 0
      %1360 = vmatpush1.bf16.msra.mxu0 0
      %1361 = vmatprep.subr.bf16.mxu0 0
      %1362 = vmatpush1.bf16.msra.mxu0 0
      %1363 = vmatprep.subr.bf16.mxu0 0
      %1364 = vmatpush1.bf16.msra.mxu0 0
      %1365 = vmatprep.subr.bf16.mxu0 0
      %1366 = vmatpush1.bf16.msra.mxu0 0
      %1367 = vmatprep.subr.bf16.mxu0 0
      %1368 = vmatpush1.bf16.msra.mxu0 0
      %1369 = vmatprep.subr.bf16.mxu0 0
      %1370 = vmatpush1.bf16.msra.mxu0 0
      %1371 = vmatprep.subr.bf16.mxu0 0
      %1372 = vmatpush1.bf16.msra.mxu0 0
      %1373 = vmatprep.subr.bf16.mxu0 0
      %1374 = vmatpush1.bf16.msra.mxu0 0
      %1375 = vmatprep.subr.bf16.mxu0 0
      %1376 = vmatpush1.bf16.msra.mxu0 0
      %1377 = vmatprep.subr.bf16.mxu0 0
      %1378 = vmatpush1.bf16.msra.mxu0 0
      %1379 = vmatprep.subr.bf16.mxu0 0
      %1380 = vmatpush1.bf16.msra.mxu0 0
      %1381 = vmatprep.mubr.bf16.mxu0 0
      %1382 = vmatmul.mubr.bf16.gmra.mrb[0].mxu0 %v1297
      %v1383 = vpop.f32.mrb[0].mxu0
      %v1384 = vadd.f32 0.0, %v1383
      %v1385 = vpop.f32.mrb[0].mxu0
      %v1386 = vpop.f32.mrb[0].mxu0
      %v1387 = vpop.f32.mrb[0].mxu0
      %1388 = vdwg.mxu0
      %v1389 = vadd.f32 %v1261, %v1343
      %v1390 = vadd.f32 %v1262, %v1345
      %v1391 = vadd.f32 %v1263, %v1384
      %v1392 = vld [vmem:[%s2] sm:$0xff]
      %1394 = vset.pattern.permute.xlu0 0
      %1395 = vperm.xlu0 %1394, %v1392
      %v1396 = vpop.permute.xlu0 %1395
      %v1398 = vadd.f32 %v1389, %v1396
      %v1399 = vadd.f32 %v1390, %v1396
      %v1400 = vadd.f32 %v1391, %v1396
      %v1402 = vlaneseq
      %v1403 = vshrl.u32 %v1402, 7
      %v1404 = vsub.s32 0, %v1403
      %v1405 = vrot.slane %v253, %v1404
      %v1406 = vlaneseq
      %v1407 = vshrl.u32 %v1406, 7
      %v1408 = vsub.s32 1, %v1407
      %v1409 = vrot.slane %v253, %v1408
      %v1410 = vlaneseq
      %v1411 = vshrl.u32 %v1410, 7
      %v1412 = vsub.s32 2, %v1411
      %v1413 = vrot.slane %v253, %v1412
      %v1417 = vmul.f32 %v1398, %v1405
      %v1418 = vmul.f32 %v1399, %v1409
      %v1419 = vmul.f32 %v1400, %v1413
      %v1420 = vadd.f32 %v1417, %v1418
      %v1421 = vadd.f32 %v1420, %v1419
      %1422 = vadd.xlane.f32.xlu0 %v1421
      %v1423 = vpop.xlane.xlu0 %1422
      %v1424 = vmul.f32 %v1423, 0.00390625
      %v1425 = vsub.f32 %v1398, %v1424
      %v1426 = vsub.f32 %v1399, %v1424
      %v1427 = vsub.f32 %v1400, %v1424
      %v1428 = vmul.f32 %v1425, %v1405
      %v1429 = vmul.f32 %v1426, %v1409
      %v1430 = vmul.f32 %v1427, %v1413
      %v1431 = vmul.f32 %v1428, %v1428
      %v1432 = vmul.f32 %v1429, %v1429
      %v1433 = vmul.f32 %v1430, %v1430
      %v1434 = vadd.f32 %v1431, %v1432
      %v1435 = vadd.f32 %v1434, %v1433
      %1436 = vadd.xlane.f32.xlu0 %v1435
      %v1437 = vpop.xlane.xlu0 %1436
      %v1438 = vmul.f32 %v1437, 0.00390625
      %v1439 = vadd.f32 %v1438, 1e-05
      %v1440 = vrsqrt.pop %v1439
      %v1441 = vmul.f32 %v1392, %v1440
      %1443 = vset.pattern.permute.xlu0 1
      %1444 = vperm.xlu0 %1443, %v1441
      %v1445 = vpop.permute.xlu0 %1444
      %v1447 = vmul.f32 %v1425, %v1445
      %v1448 = vmul.f32 %v1426, %v1445
      %v1449 = vmul.f32 %v1427, %v1445
      %1450 = vset.pattern.permute.xlu0 2
      %1451 = vperm.xlu0 %1450, %v1392
      %v1452 = vpop.permute.xlu0 %1451
      %v1454 = vadd.f32 %v1447, %v1452
      %v1455 = vadd.f32 %v1448, %v1452
      %v1456 = vadd.f32 %v1449, %v1452
      %v1457 = vmul.f32 %v1454, 0.01
      %v1458 = vmul.f32 %v1455, 0.01
      %v1459 = vmul.f32 %v1456, 0.01
      %v1460 = vmax.f32 %v1454, %v1457
      %v1461 = vmax.f32 %v1455, %v1458
      %v1462 = vmax.f32 %v1456, %v1459
      %v1463 = vmul.f32 %v1460, %v1405
      %v1464 = vmul.f32 %v1461, %v1409
      %v1465 = vmul.f32 %v1462, %v1413
      %v1466 = vpack.c.bf16 %v1463, %v1463
      %v1467 = vpack.c.bf16 %v1464, %v1464
      %v1468 = vpack.c.bf16 %v1465, %v1465
      %v1472 = vunpack.c.l.b16 %v1466
      %v1473 = vunpack.c.l.b16 %v1467
      %v1474 = vunpack.c.l.b16 %v1468
      %v1475 = vpack.c.b16 %v1473, %v1472
      %v1476 = vpack.c.b16 %v1474, %v1474
      %1479 = vst [vmem:[#allocation2 + $0x4] sm:$0xff] %v1475
      %1480 = vst [vmem:[#allocation2 + $0xc] sm:$0xf] %v1476
      %v1481 = vld [vmem:[%s3] sm:$0xf]
      %v1482 = vld [vmem:[#allocation2] sm:$0xff]
      %v1483 = vld [vmem:[#allocation2 + $0x8] sm:$0xff]
      %v1484 = vld [vmem:[%s3 + $0x4] sm:$0xf]
      %v1487 = vunpack.c.l.b16 %v1482
      %v1488 = vunpack.c.h.b16 %v1482
      %v1489 = vunpack.c.l.b16 %v1483
      %v1490 = vunpack.c.h.b16 %v1483
      %v1491 = vpack.c.b16 %v1487, %v1487
      %v1492 = vpack.c.b16 %v1488, %v1488
      %v1493 = vpack.c.b16 %v1489, %v1489
      %v1494 = vpack.c.b16 %v1490, %v1490
      %1495 = vrot.lane.b32.xlu0 %v1491, 24
      %v1496 = vpop.permute.xlu0 %1495
      %1497 = vrot.lane.b32.xlu0 %v1492, 24
      %v1498 = vpop.permute.xlu0 %1497
      %1499 = vrot.lane.b32.xlu0 %v1493, 24
      %v1500 = vpop.permute.xlu0 %1499
      %1501 = vrot.lane.b32.xlu0 %v1494, 24
      %v1502 = vpop.permute.xlu0 %1501
      %vm1503 = vcmask 195584
      %v1504 = vsel %vm1503, %v1496, %v1498
      %v1505 = vsel %vm1503, %v1498, %v1500
      %v1506 = vsel %vm1503, %v1500, %v1502
      %vm1507 = vcmask 64512
      %v1509 = vsel %vm1507, %v1484, 0
      %vm1511 = vcmask 1043456
      %v1513 = vsel %vm1511, %v1504, 0
      %v1516 = vsel %vm1511, %v1505, 0
      %v1519 = vsel %vm1511, %v1506, 0
      %1521 = vmatprep.subr.bf16.mxu0 %v1516
      %1522 = vmatpush1.bf16.msra.mxu0 %v1513
      %1523 = vmatprep.subr.bf16.mxu0 0
      %1524 = vmatpush1.bf16.msra.mxu0 0
      %1525 = vmatprep.subr.bf16.mxu0 0
      %1526 = vmatpush1.bf16.msra.mxu0 0
      %1527 = vmatprep.subr.bf16.mxu0 0
      %1528 = vmatpush1.bf16.msra.mxu0 0
      %1529 = vmatprep.subr.bf16.mxu0 0
      %1530 = vmatpush1.bf16.msra.mxu0 0
      %1531 = vmatprep.subr.bf16.mxu0 0
      %1532 = vmatpush1.bf16.msra.mxu0 0
      %1533 = vmatprep.subr.bf16.mxu0 0
      %1534 = vmatpush1.bf16.msra.mxu0 0
      %1535 = vmatprep.subr.bf16.mxu0 0
      %1536 = vmatpush1.bf16.msra.mxu0 0
      %1537 = vmatprep.subr.bf16.mxu0 0
      %1538 = vmatpush1.bf16.msra.mxu0 0
      %1539 = vmatprep.subr.bf16.mxu0 0
      %1540 = vmatpush1.bf16.msra.mxu0 0
      %1541 = vmatprep.subr.bf16.mxu0 0
      %1542 = vmatpush1.bf16.msra.mxu0 0
      %1543 = vmatprep.subr.bf16.mxu0 0
      %1544 = vmatpush1.bf16.msra.mxu0 0
      %1545 = vmatprep.subr.bf16.mxu0 0
      %1546 = vmatpush1.bf16.msra.mxu0 0
      %1547 = vmatprep.subr.bf16.mxu0 0
      %1548 = vmatpush1.bf16.msra.mxu0 0
      %1549 = vmatprep.subr.bf16.mxu0 0
      %1550 = vmatpush1.bf16.msra.mxu0 0
      %1551 = vmatprep.subr.bf16.mxu0 0
      %1552 = vmatpush1.bf16.msra.mxu0 0
      %1553 = vmatprep.mubr.bf16.mxu0 0
      %1554 = vmatmul.mubr.bf16.gmra.mrb[0].mxu0 %v1509
      %v1555 = vpop.f32.mrb[0].mxu0
      %v1556 = vadd.f32 0.0, %v1555
      %v1557 = vpop.f32.mrb[0].mxu0
      %v1558 = vadd.f32 0.0, %v1557
      %v1559 = vpop.f32.mrb[0].mxu0
      %v1560 = vpop.f32.mrb[0].mxu0
      %1561 = vdwg.mxu0
      %1562 = vmatprep.subr.bf16.mxu0 0
      %1563 = vmatpush1.bf16.msra.mxu0 %v1519
      %1564 = vmatprep.subr.bf16.mxu0 0
      %1565 = vmatpush1.bf16.msra.mxu0 0
      %1566 = vmatprep.subr.bf16.mxu0 0
      %1567 = vmatpush1.bf16.msra.mxu0 0
      %1568 = vmatprep.subr.bf16.mxu0 0
      %1569 = vmatpush1.bf16.msra.mxu0 0
      %1570 = vmatprep.subr.bf16.mxu0 0
      %1571 = vmatpush1.bf16.msra.mxu0 0
      %1572 = vmatprep.subr.bf16.mxu0 0
      %1573 = vmatpush1.bf16.msra.mxu0 0
      %1574 = vmatprep.subr.bf16.mxu0 0
      %1575 = vmatpush1.bf16.msra.mxu0 0
      %1576 = vmatprep.subr.bf16.mxu0 0
      %1577 = vmatpush1.bf16.msra.mxu0 0
      %1578 = vmatprep.subr.bf16.mxu0 0
      %1579 = vmatpush1.bf16.msra.mxu0 0
      %1580 = vmatprep.subr.bf16.mxu0 0
      %1581 = vmatpush1.bf16.msra.mxu0 0
      %1582 = vmatprep.subr.bf16.mxu0 0
      %1583 = vmatpush1.bf16.msra.mxu0 0
      %1584 = vmatprep.subr.bf16.mxu0 0
      %1585 = vmatpush1.bf16.msra.mxu0 0
      %1586 = vmatprep.subr.bf16.mxu0 0
      %1587 = vmatpush1.bf16.msra.mxu0 0
      %1588 = vmatprep.subr.bf16.mxu0 0
      %1589 = vmatpush1.bf16.msra.mxu0 0
      %1590 = vmatprep.subr.bf16.mxu0 0
      %1591 = vmatpush1.bf16.msra.mxu0 0
      %1592 = vmatprep.subr.bf16.mxu0 0
      %1593 = vmatpush1.bf16.msra.mxu0 0
      %1594 = vmatprep.mubr.bf16.mxu0 0
      %1595 = vmatmul.mubr.bf16.gmra.mrb[0].mxu0 %v1509
      %v1596 = vpop.f32.mrb[0].mxu0
      %v1597 = vadd.f32 0.0, %v1596
      %v1598 = vpop.f32.mrb[0].mxu0
      %v1599 = vpop.f32.mrb[0].mxu0
      %v1600 = vpop.f32.mrb[0].mxu0
      %1601 = vdwg.mxu0
      %1602 = vrot.lane.b32.xlu0 %v1491, 25
      %v1603 = vpop.permute.xlu0 %1602
      %1604 = vrot.lane.b32.xlu0 %v1492, 25
      %v1605 = vpop.permute.xlu0 %1604
      %1606 = vrot.lane.b32.xlu0 %v1493, 25
      %v1607 = vpop.permute.xlu0 %1606
      %1608 = vrot.lane.b32.xlu0 %v1494, 25
      %v1609 = vpop.permute.xlu0 %1608
      %vm1610 = vcmask 203776
      %v1611 = vsel %vm1610, %v1603, %v1605
      %v1612 = vsel %vm1610, %v1605, %v1607
      %v1613 = vsel %vm1610, %v1607, %v1609
      %v1615 = vsel %vm1507, %v1481, 0
      %v1618 = vsel %vm1511, %v1611, 0
      %v1621 = vsel %vm1511, %v1612, 0
      %v1624 = vsel %vm1511, %v1613, 0
      %1626 = vmatprep.subr.bf16.mxu0 %v1621
      %1627 = vmatpush1.bf16.msra.mxu0 %v1618
      %1628 = vmatprep.subr.bf16.mxu0 0
      %1629 = vmatpush1.bf16.msra.mxu0 0
      %1630 = vmatprep.subr.bf16.mxu0 0
      %1631 = vmatpush1.bf16.msra.mxu0 0
      %1632 = vmatprep.subr.bf16.mxu0 0
      %1633 = vmatpush1.bf16.msra.mxu0 0
      %1634 = vmatprep.subr.bf16.mxu0 0
      %1635 = vmatpush1.bf16.msra.mxu0 0
      %1636 = vmatprep.subr.bf16.mxu0 0
      %1637 = vmatpush1.bf16.msra.mxu0 0
      %1638 = vmatprep.subr.bf16.mxu0 0
      %1639 = vmatpush1.bf16.msra.mxu0 0
      %1640 = vmatprep.subr.bf16.mxu0 0
      %1641 = vmatpush1.bf16.msra.mxu0 0
      %1642 = vmatprep.subr.bf16.mxu0 0
      %1643 = vmatpush1.bf16.msra.mxu0 0
      %1644 = vmatprep.subr.bf16.mxu0 0
      %1645 = vmatpush1.bf16.msra.mxu0 0
      %1646 = vmatprep.subr.bf16.mxu0 0
      %1647 = vmatpush1.bf16.msra.mxu0 0
      %1648 = vmatprep.subr.bf16.mxu0 0
      %1649 = vmatpush1.bf16.msra.mxu0 0
      %1650 = vmatprep.subr.bf16.mxu0 0
      %1651 = vmatpush1.bf16.msra.mxu0 0
      %1652 = vmatprep.subr.bf16.mxu0 0
      %1653 = vmatpush1.bf16.msra.mxu0 0
      %1654 = vmatprep.subr.bf16.mxu0 0
      %1655 = vmatpush1.bf16.msra.mxu0 0
      %1656 = vmatprep.subr.bf16.mxu0 0
      %1657 = vmatpush1.bf16.msra.mxu0 0
      %1658 = vmatprep.mubr.bf16.mxu0 0
      %1659 = vmatmul.mubr.bf16.gmra.mrb[0].mxu0 %v1615
      %v1660 = vpop.f32.mrb[0].mxu0
      %v1661 = vadd.f32 %v1556, %v1660
      %v1662 = vpop.f32.mrb[0].mxu0
      %v1663 = vadd.f32 %v1558, %v1662
      %v1664 = vpop.f32.mrb[0].mxu0
      %v1665 = vpop.f32.mrb[0].mxu0
      %1666 = vdwg.mxu0
      %1667 = vmatprep.subr.bf16.mxu0 0
      %1668 = vmatpush1.bf16.msra.mxu0 %v1624
      %1669 = vmatprep.subr.bf16.mxu0 0
      %1670 = vmatpush1.bf16.msra.mxu0 0
      %1671 = vmatprep.subr.bf16.mxu0 0
      %1672 = vmatpush1.bf16.msra.mxu0 0
      %1673 = vmatprep.subr.bf16.mxu0 0
      %1674 = vmatpush1.bf16.msra.mxu0 0
      %1675 = vmatprep.subr.bf16.mxu0 0
      %1676 = vmatpush1.bf16.msra.mxu0 0
      %1677 = vmatprep.subr.bf16.mxu0 0
      %1678 = vmatpush1.bf16.msra.mxu0 0
      %1679 = vmatprep.subr.bf16.mxu0 0
      %1680 = vmatpush1.bf16.msra.mxu0 0
      %1681 = vmatprep.subr.bf16.mxu0 0
      %1682 = vmatpush1.bf16.msra.mxu0 0
      %1683 = vmatprep.subr.bf16.mxu0 0
      %1684 = vmatpush1.bf16.msra.mxu0 0
      %1685 = vmatprep.subr.bf16.mxu0 0
      %1686 = vmatpush1.bf16.msra.mxu0 0
      %1687 = vmatprep.subr.bf16.mxu0 0
      %1688 = vmatpush1.bf16.msra.mxu0 0
      %1689 = vmatprep.subr.bf16.mxu0 0
      %1690 = vmatpush1.bf16.msra.mxu0 0
      %1691 = vmatprep.subr.bf16.mxu0 0
      %1692 = vmatpush1.bf16.msra.mxu0 0
      %1693 = vmatprep.subr.bf16.mxu0 0
      %1694 = vmatpush1.bf16.msra.mxu0 0
      %1695 = vmatprep.subr.bf16.mxu0 0
      %1696 = vmatpush1.bf16.msra.mxu0 0
      %1697 = vmatprep.subr.bf16.mxu0 0
      %1698 = vmatpush1.bf16.msra.mxu0 0
      %1699 = vmatprep.mubr.bf16.mxu0 0
      %1700 = vmatmul.mubr.bf16.gmra.mrb[0].mxu0 %v1615
      %v1701 = vpop.f32.mrb[0].mxu0
      %v1702 = vadd.f32 %v1597, %v1701
      %v1703 = vpop.f32.mrb[0].mxu0
      %v1704 = vpop.f32.mrb[0].mxu0
      %v1705 = vpop.f32.mrb[0].mxu0
      %1706 = vdwg.mxu0
      %v1707 = vld [vmem:[%s3 + $0x8] sm:$0xf]
      %1708 = vrot.lane.b32.xlu0 %v1491, 23
      %v1709 = vpop.permute.xlu0 %1708
      %1710 = vrot.lane.b32.xlu0 %v1492, 23
      %v1711 = vpop.permute.xlu0 %1710
      %1712 = vrot.lane.b32.xlu0 %v1493, 23
      %v1713 = vpop.permute.xlu0 %1712
      %1714 = vrot.lane.b32.xlu0 %v1494, 23
      %v1715 = vpop.permute.xlu0 %1714
      %vm1716 = vcmask 187392
      %v1717 = vsel %vm1716, %v1709, %v1711
      %v1718 = vsel %vm1716, %v1711, %v1713
      %v1719 = vsel %vm1716, %v1713, %v1715
      %v1721 = vsel %vm1507, %v1707, 0
      %v1724 = vsel %vm1511, %v1717, 0
      %v1727 = vsel %vm1511, %v1718, 0
      %v1730 = vsel %vm1511, %v1719, 0
      %1732 = vmatprep.subr.bf16.mxu0 %v1727
      %1733 = vmatpush1.bf16.msra.mxu0 %v1724
      %1734 = vmatprep.subr.bf16.mxu0 0
      %1735 = vmatpush1.bf16.msra.mxu0 0
      %1736 = vmatprep.subr.bf16.mxu0 0
      %1737 = vmatpush1.bf16.msra.mxu0 0
      %1738 = vmatprep.subr.bf16.mxu0 0
      %1739 = vmatpush1.bf16.msra.mxu0 0
      %1740 = vmatprep.subr.bf16.mxu0 0
      %1741 = vmatpush1.bf16.msra.mxu0 0
      %1742 = vmatprep.subr.bf16.mxu0 0
      %1743 = vmatpush1.bf16.msra.mxu0 0
      %1744 = vmatprep.subr.bf16.mxu0 0
      %1745 = vmatpush1.bf16.msra.mxu0 0
      %1746 = vmatprep.subr.bf16.mxu0 0
      %1747 = vmatpush1.bf16.msra.mxu0 0
      %1748 = vmatprep.subr.bf16.mxu0 0
      %1749 = vmatpush1.bf16.msra.mxu0 0
      %1750 = vmatprep.subr.bf16.mxu0 0
      %1751 = vmatpush1.bf16.msra.mxu0 0
      %1752 = vmatprep.subr.bf16.mxu0 0
      %1753 = vmatpush1.bf16.msra.mxu0 0
      %1754 = vmatprep.subr.bf16.mxu0 0
      %1755 = vmatpush1.bf16.msra.mxu0 0
      %1756 = vmatprep.subr.bf16.mxu0 0
      %1757 = vmatpush1.bf16.msra.mxu0 0
      %1758 = vmatprep.subr.bf16.mxu0 0
      %1759 = vmatpush1.bf16.msra.mxu0 0
      %1760 = vmatprep.subr.bf16.mxu0 0
      %1761 = vmatpush1.bf16.msra.mxu0 0
      %1762 = vmatprep.subr.bf16.mxu0 0
      %1763 = vmatpush1.bf16.msra.mxu0 0
      %1764 = vmatprep.mubr.bf16.mxu0 0
      %1765 = vmatmul.mubr.bf16.gmra.mrb[0].mxu0 %v1721
      %v1766 = vpop.f32.mrb[0].mxu0
      %v1767 = vadd.f32 0.0, %v1766
      %v1768 = vpop.f32.mrb[0].mxu0
      %v1769 = vadd.f32 0.0, %v1768
      %v1770 = vpop.f32.mrb[0].mxu0
      %v1771 = vpop.f32.mrb[0].mxu0
      %1772 = vdwg.mxu0
      %1773 = vmatprep.subr.bf16.mxu0 0
      %1774 = vmatpush1.bf16.msra.mxu0 %v1730
      %1775 = vmatprep.subr.bf16.mxu0 0
      %1776 = vmatpush1.bf16.msra.mxu0 0
      %1777 = vmatprep.subr.bf16.mxu0 0
      %1778 = vmatpush1.bf16.msra.mxu0 0
      %1779 = vmatprep.subr.bf16.mxu0 0
      %1780 = vmatpush1.bf16.msra.mxu0 0
      %1781 = vmatprep.subr.bf16.mxu0 0
      %1782 = vmatpush1.bf16.msra.mxu0 0
      %1783 = vmatprep.subr.bf16.mxu0 0
      %1784 = vmatpush1.bf16.msra.mxu0 0
      %1785 = vmatprep.subr.bf16.mxu0 0
      %1786 = vmatpush1.bf16.msra.mxu0 0
      %1787 = vmatprep.subr.bf16.mxu0 0
      %1788 = vmatpush1.bf16.msra.mxu0 0
      %1789 = vmatprep.subr.bf16.mxu0 0
      %1790 = vmatpush1.bf16.msra.mxu0 0
      %1791 = vmatprep.subr.bf16.mxu0 0
      %1792 = vmatpush1.bf16.msra.mxu0 0
      %1793 = vmatprep.subr.bf16.mxu0 0
      %1794 = vmatpush1.bf16.msra.mxu0 0
      %1795 = vmatprep.subr.bf16.mxu0 0
      %1796 = vmatpush1.bf16.msra.mxu0 0
      %1797 = vmatprep.subr.bf16.mxu0 0
      %1798 = vmatpush1.bf16.msra.mxu0 0
      %1799 = vmatprep.subr.bf16.mxu0 0
      %1800 = vmatpush1.bf16.msra.mxu0 0
      %1801 = vmatprep.subr.bf16.mxu0 0
      %1802 = vmatpush1.bf16.msra.mxu0 0
      %1803 = vmatprep.subr.bf16.mxu0 0
      %1804 = vmatpush1.bf16.msra.mxu0 0
      %1805 = vmatprep.mubr.bf16.mxu0 0
      %1806 = vmatmul.mubr.bf16.gmra.mrb[0].mxu0 %v1721
      %v1807 = vpop.f32.mrb[0].mxu0
      %v1808 = vadd.f32 0.0, %v1807
      %v1809 = vpop.f32.mrb[0].mxu0
      %v1810 = vpop.f32.mrb[0].mxu0
      %v1811 = vpop.f32.mrb[0].mxu0
      %1812 = vdwg.mxu0
      %v1813 = vadd.f32 %v1661, %v1767
      %v1814 = vadd.f32 %v1663, %v1769
      %v1815 = vadd.f32 %v1702, %v1808
      %v1816 = vld [vmem:[%s3 + $0xc] sm:$0xf]
      %1817 = vrot.lane.b32.xlu0 %v1491, 1
      %v1818 = vpop.permute.xlu0 %1817
      %1819 = vrot.lane.b32.xlu0 %v1492, 1
      %v1820 = vpop.permute.xlu0 %1819
      %1821 = vrot.lane.b32.xlu0 %v1493, 1
      %v1822 = vpop.permute.xlu0 %1821
      %1823 = vrot.lane.b32.xlu0 %v1494, 1
      %v1824 = vpop.permute.xlu0 %1823
      %vm1825 = vcmask 7168
      %v1826 = vsel %vm1825, %v1818, %v1820
      %v1827 = vsel %vm1825, %v1820, %v1822
      %v1828 = vsel %vm1825, %v1822, %v1824
      %v1830 = vsel %vm1507, %v1816, 0
      %v1833 = vsel %vm1511, %v1826, 0
      %v1836 = vsel %vm1511, %v1827, 0
      %v1839 = vsel %vm1511, %v1828, 0
      %1841 = vmatprep.subr.bf16.mxu0 %v1836
      %1842 = vmatpush1.bf16.msra.mxu0 %v1833
      %1843 = vmatprep.subr.bf16.mxu0 0
      %1844 = vmatpush1.bf16.msra.mxu0 0
      %1845 = vmatprep.subr.bf16.mxu0 0
      %1846 = vmatpush1.bf16.msra.mxu0 0
      %1847 = vmatprep.subr.bf16.mxu0 0
      %1848 = vmatpush1.bf16.msra.mxu0 0
      %1849 = vmatprep.subr.bf16.mxu0 0
      %1850 = vmatpush1.bf16.msra.mxu0 0
      %1851 = vmatprep.subr.bf16.mxu0 0
      %1852 = vmatpush1.bf16.msra.mxu0 0
      %1853 = vmatprep.subr.bf16.mxu0 0
      %1854 = vmatpush1.bf16.msra.mxu0 0
      %1855 = vmatprep.subr.bf16.mxu0 0
      %1856 = vmatpush1.bf16.msra.mxu0 0
      %1857 = vmatprep.subr.bf16.mxu0 0
      %1858 = vmatpush1.bf16.msra.mxu0 0
      %1859 = vmatprep.subr.bf16.mxu0 0
      %1860 = vmatpush1.bf16.msra.mxu0 0
      %1861 = vmatprep.subr.bf16.mxu0 0
      %1862 = vmatpush1.bf16.msra.mxu0 0
      %1863 = vmatprep.subr.bf16.mxu0 0
      %1864 = vmatpush1.bf16.msra.mxu0 0
      %1865 = vmatprep.subr.bf16.mxu0 0
      %1866 = vmatpush1.bf16.msra.mxu0 0
      %1867 = vmatprep.subr.bf16.mxu0 0
      %1868 = vmatpush1.bf16.msra.mxu0 0
      %1869 = vmatprep.subr.bf16.mxu0 0
      %1870 = vmatpush1.bf16.msra.mxu0 0
      %1871 = vmatprep.subr.bf16.mxu0 0
      %1872 = vmatpush1.bf16.msra.mxu0 0
      %1873 = vmatprep.mubr.bf16.mxu0 0
      %1874 = vmatmul.mubr.bf16.gmra.mrb[0].mxu0 %v1830
      %v1875 = vpop.f32.mrb[0].mxu0
      %v1876 = vadd.f32 0.0, %v1875
      %v1877 = vpop.f32.mrb[0].mxu0
      %v1878 = vadd.f32 0.0, %v1877
      %v1879 = vpop.f32.mrb[0].mxu0
      %v1880 = vpop.f32.mrb[0].mxu0
      %1881 = vdwg.mxu0
      %1882 = vmatprep.subr.bf16.mxu0 0
      %1883 = vmatpush1.bf16.msra.mxu0 %v1839
      %1884 = vmatprep.subr.bf16.mxu0 0
      %1885 = vmatpush1.bf16.msra.mxu0 0
      %1886 = vmatprep.subr.bf16.mxu0 0
      %1887 = vmatpush1.bf16.msra.mxu0 0
      %1888 = vmatprep.subr.bf16.mxu0 0
      %1889 = vmatpush1.bf16.msra.mxu0 0
      %1890 = vmatprep.subr.bf16.mxu0 0
      %1891 = vmatpush1.bf16.msra.mxu0 0
      %1892 = vmatprep.subr.bf16.mxu0 0
      %1893 = vmatpush1.bf16.msra.mxu0 0
      %1894 = vmatprep.subr.bf16.mxu0 0
      %1895 = vmatpush1.bf16.msra.mxu0 0
      %1896 = vmatprep.subr.bf16.mxu0 0
      %1897 = vmatpush1.bf16.msra.mxu0 0
      %1898 = vmatprep.subr.bf16.mxu0 0
      %1899 = vmatpush1.bf16.msra.mxu0 0
      %1900 = vmatprep.subr.bf16.mxu0 0
      %1901 = vmatpush1.bf16.msra.mxu0 0
      %1902 = vmatprep.subr.bf16.mxu0 0
      %1903 = vmatpush1.bf16.msra.mxu0 0
      %1904 = vmatprep.subr.bf16.mxu0 0
      %1905 = vmatpush1.bf16.msra.mxu0 0
      %1906 = vmatprep.subr.bf16.mxu0 0
      %1907 = vmatpush1.bf16.msra.mxu0 0
      %1908 = vmatprep.subr.bf16.mxu0 0
      %1909 = vmatpush1.bf16.msra.mxu0 0
      %1910 = vmatprep.subr.bf16.mxu0 0
      %1911 = vmatpush1.bf16.msra.mxu0 0
      %1912 = vmatprep.subr.bf16.mxu0 0
      %1913 = vmatpush1.bf16.msra.mxu0 0
      %1914 = vmatprep.mubr.bf16.mxu0 0
      %1915 = vmatmul.mubr.bf16.gmra.mrb[0].mxu0 %v1830
      %v1916 = vpop.f32.mrb[0].mxu0
      %v1917 = vadd.f32 0.0, %v1916
      %v1918 = vpop.f32.mrb[0].mxu0
      %v1919 = vpop.f32.mrb[0].mxu0
      %v1920 = vpop.f32.mrb[0].mxu0
      %1921 = vdwg.mxu0
      %v1922 = vadd.f32 %v1813, %v1876
      %v1923 = vadd.f32 %v1814, %v1878
      %v1924 = vadd.f32 %v1815, %v1917
      %v1925 = vld [vmem:[%s3 + $0x10] sm:$0xf]
      %v1926 = vld [vmem:[#allocation2 + $0x4] sm:$0xff]
      %v1927 = vld [vmem:[#allocation2 + $0xc] sm:$0xf]
      %v1930 = vunpack.c.l.b16 %v1926
      %v1931 = vunpack.c.h.b16 %v1926
      %v1932 = vunpack.c.l.b16 %v1927
      %v1933 = vpack.c.b16 %v1930, %v1930
      %v1934 = vpack.c.b16 %v1931, %v1931
      %v1935 = vpack.c.b16 %v1932, %v1932
      %v1937 = vsel %vm1507, %v1925, 0
      %v1940 = vsel %vm1511, %v1933, 0
      %v1943 = vsel %vm1511, %v1934, 0
      %v1946 = vsel %vm1511, %v1935, 0
      %1948 = vmatprep.subr.bf16.mxu0 %v1943
      %1949 = vmatpush1.bf16.msra.mxu0 %v1940
      %1950 = vmatprep.subr.bf16.mxu0 0
      %1951 = vmatpush1.bf16.msra.mxu0 0
      %1952 = vmatprep.subr.bf16.mxu0 0
      %1953 = vmatpush1.bf16.msra.mxu0 0
      %1954 = vmatprep.subr.bf16.mxu0 0
      %1955 = vmatpush1.bf16.msra.mxu0 0
      %1956 = vmatprep.subr.bf16.mxu0 0
      %1957 = vmatpush1.bf16.msra.mxu0 0
      %1958 = vmatprep.subr.bf16.mxu0 0
      %1959 = vmatpush1.bf16.msra.mxu0 0
      %1960 = vmatprep.subr.bf16.mxu0 0
      %1961 = vmatpush1.bf16.msra.mxu0 0
      %1962 = vmatprep.subr.bf16.mxu0 0
      %1963 = vmatpush1.bf16.msra.mxu0 0
      %1964 = vmatprep.subr.bf16.mxu0 0
      %1965 = vmatpush1.bf16.msra.mxu0 0
      %1966 = vmatprep.subr.bf16.mxu0 0
      %1967 = vmatpush1.bf16.msra.mxu0 0
      %1968 = vmatprep.subr.bf16.mxu0 0
      %1969 = vmatpush1.bf16.msra.mxu0 0
      %1970 = vmatprep.subr.bf16.mxu0 0
      %1971 = vmatpush1.bf16.msra.mxu0 0
      %1972 = vmatprep.subr.bf16.mxu0 0
      %1973 = vmatpush1.bf16.msra.mxu0 0
      %1974 = vmatprep.subr.bf16.mxu0 0
      %1975 = vmatpush1.bf16.msra.mxu0 0
      %1976 = vmatprep.subr.bf16.mxu0 0
      %1977 = vmatpush1.bf16.msra.mxu0 0
      %1978 = vmatprep.subr.bf16.mxu0 0
      %1979 = vmatpush1.bf16.msra.mxu0 0
      %1980 = vmatprep.mubr.bf16.mxu0 0
      %1981 = vmatmul.mubr.bf16.gmra.mrb[0].mxu0 %v1937
      %v1982 = vpop.f32.mrb[0].mxu0
      %v1983 = vadd.f32 0.0, %v1982
      %v1984 = vpop.f32.mrb[0].mxu0
      %v1985 = vadd.f32 0.0, %v1984
      %v1986 = vpop.f32.mrb[0].mxu0
      %v1987 = vpop.f32.mrb[0].mxu0
      %1988 = vdwg.mxu0
      %1989 = vmatprep.subr.bf16.mxu0 0
      %1990 = vmatpush1.bf16.msra.mxu0 %v1946
      %1991 = vmatprep.subr.bf16.mxu0 0
      %1992 = vmatpush1.bf16.msra.mxu0 0
      %1993 = vmatprep.subr.bf16.mxu0 0
      %1994 = vmatpush1.bf16.msra.mxu0 0
      %1995 = vmatprep.subr.bf16.mxu0 0
      %1996 = vmatpush1.bf16.msra.mxu0 0
      %1997 = vmatprep.subr.bf16.mxu0 0
      %1998 = vmatpush1.bf16.msra.mxu0 0
      %1999 = vmatprep.subr.bf16.mxu0 0
      %2000 = vmatpush1.bf16.msra.mxu0 0
      %2001 = vmatprep.subr.bf16.mxu0 0
      %2002 = vmatpush1.bf16.msra.mxu0 0
      %2003 = vmatprep.subr.bf16.mxu0 0
      %2004 = vmatpush1.bf16.msra.mxu0 0
      %2005 = vmatprep.subr.bf16.mxu0 0
      %2006 = vmatpush1.bf16.msra.mxu0 0
      %2007 = vmatprep.subr.bf16.mxu0 0
      %2008 = vmatpush1.bf16.msra.mxu0 0
      %2009 = vmatprep.subr.bf16.mxu0 0
      %2010 = vmatpush1.bf16.msra.mxu0 0
      %2011 = vmatprep.subr.bf16.mxu0 0
      %2012 = vmatpush1.bf16.msra.mxu0 0
      %2013 = vmatprep.subr.bf16.mxu0 0
      %2014 = vmatpush1.bf16.msra.mxu0 0
      %2015 = vmatprep.subr.bf16.mxu0 0
      %2016 = vmatpush1.bf16.msra.mxu0 0
      %2017 = vmatprep.subr.bf16.mxu0 0
      %2018 = vmatpush1.bf16.msra.mxu0 0
      %2019 = vmatprep.subr.bf16.mxu0 0
      %2020 = vmatpush1.bf16.msra.mxu0 0
      %2021 = vmatprep.mubr.bf16.mxu0 0
      %2022 = vmatmul.mubr.bf16.gmra.mrb[0].mxu0 %v1937
      %v2023 = vpop.f32.mrb[0].mxu0
      %v2024 = vadd.f32 0.0, %v2023
      %v2025 = vpop.f32.mrb[0].mxu0
      %v2026 = vpop.f32.mrb[0].mxu0
      %v2027 = vpop.f32.mrb[0].mxu0
      %2028 = vdwg.mxu0
      %v2029 = vadd.f32 %v1922, %v1983
      %v2030 = vadd.f32 %v1923, %v1985
      %v2031 = vadd.f32 %v1924, %v2024
      %v2032 = vld [vmem:[%s3 + $0x14] sm:$0xf]
      %v2033 = vld [vmem:[#allocation2 + $0x4] sm:$0xff]
      %v2034 = vld [vmem:[#allocation2 + $0xc] sm:$0xff]
      %v2037 = vunpack.c.l.b16 %v2033
      %v2038 = vunpack.c.h.b16 %v2033
      %v2039 = vunpack.c.l.b16 %v2034
      %v2040 = vunpack.c.h.b16 %v2034
      %v2041 = vpack.c.b16 %v2037, %v2037
      %v2042 = vpack.c.b16 %v2038, %v2038
      %v2043 = vpack.c.b16 %v2039, %v2039
      %v2044 = vpack.c.b16 %v2040, %v2040
      %2045 = vrot.lane.b32.xlu0 %v2041, 127
      %v2046 = vpop.permute.xlu0 %2045
      %2047 = vrot.lane.b32.xlu0 %v2042, 127
      %v2048 = vpop.permute.xlu0 %2047
      %2049 = vrot.lane.b32.xlu0 %v2043, 127
      %v2050 = vpop.permute.xlu0 %2049
      %2051 = vrot.lane.b32.xlu0 %v2044, 127
      %v2052 = vpop.permute.xlu0 %2051
      %v2053 = vsel %vm287, %v2046, %v2048
      %v2054 = vsel %vm287, %v2048, %v2050
      %v2055 = vsel %vm287, %v2050, %v2052
      %v2057 = vsel %vm1507, %v2032, 0
      %v2060 = vsel %vm1511, %v2053, 0
      %v2063 = vsel %vm1511, %v2054, 0
      %v2066 = vsel %vm1511, %v2055, 0
      %2068 = vmatprep.subr.bf16.mxu0 %v2063
      %2069 = vmatpush1.bf16.msra.mxu0 %v2060
      %2070 = vmatprep.subr.bf16.mxu0 0
      %2071 = vmatpush1.bf16.msra.mxu0 0
      %2072 = vmatprep.subr.bf16.mxu0 0
      %2073 = vmatpush1.bf16.msra.mxu0 0
      %2074 = vmatprep.subr.bf16.mxu0 0
      %2075 = vmatpush1.bf16.msra.mxu0 0
      %2076 = vmatprep.subr.bf16.mxu0 0
      %2077 = vmatpush1.bf16.msra.mxu0 0
      %2078 = vmatprep.subr.bf16.mxu0 0
      %2079 = vmatpush1.bf16.msra.mxu0 0
      %2080 = vmatprep.subr.bf16.mxu0 0
      %2081 = vmatpush1.bf16.msra.mxu0 0
      %2082 = vmatprep.subr.bf16.mxu0 0
      %2083 = vmatpush1.bf16.msra.mxu0 0
      %2084 = vmatprep.subr.bf16.mxu0 0
      %2085 = vmatpush1.bf16.msra.mxu0 0
      %2086 = vmatprep.subr.bf16.mxu0 0
      %2087 = vmatpush1.bf16.msra.mxu0 0
      %2088 = vmatprep.subr.bf16.mxu0 0
      %2089 = vmatpush1.bf16.msra.mxu0 0
      %2090 = vmatprep.subr.bf16.mxu0 0
      %2091 = vmatpush1.bf16.msra.mxu0 0
      %2092 = vmatprep.subr.bf16.mxu0 0
      %2093 = vmatpush1.bf16.msra.mxu0 0
      %2094 = vmatprep.subr.bf16.mxu0 0
      %2095 = vmatpush1.bf16.msra.mxu0 0
      %2096 = vmatprep.subr.bf16.mxu0 0
      %2097 = vmatpush1.bf16.msra.mxu0 0
      %2098 = vmatprep.subr.bf16.mxu0 0
      %2099 = vmatpush1.bf16.msra.mxu0 0
      %2100 = vmatprep.mubr.bf16.mxu0 0
      %2101 = vmatmul.mubr.bf16.gmra.mrb[0].mxu0 %v2057
      %v2102 = vpop.f32.mrb[0].mxu0
      %v2103 = vadd.f32 0.0, %v2102
      %v2104 = vpop.f32.mrb[0].mxu0
      %v2105 = vadd.f32 0.0, %v2104
      %v2106 = vpop.f32.mrb[0].mxu0
      %v2107 = vpop.f32.mrb[0].mxu0
      %2108 = vdwg.mxu0
      %2109 = vmatprep.subr.bf16.mxu0 0
      %2110 = vmatpush1.bf16.msra.mxu0 %v2066
      %2111 = vmatprep.subr.bf16.mxu0 0
      %2112 = vmatpush1.bf16.msra.mxu0 0
      %2113 = vmatprep.subr.bf16.mxu0 0
      %2114 = vmatpush1.bf16.msra.mxu0 0
      %2115 = vmatprep.subr.bf16.mxu0 0
      %2116 = vmatpush1.bf16.msra.mxu0 0
      %2117 = vmatprep.subr.bf16.mxu0 0
      %2118 = vmatpush1.bf16.msra.mxu0 0
      %2119 = vmatprep.subr.bf16.mxu0 0
      %2120 = vmatpush1.bf16.msra.mxu0 0
      %2121 = vmatprep.subr.bf16.mxu0 0
      %2122 = vmatpush1.bf16.msra.mxu0 0
      %2123 = vmatprep.subr.bf16.mxu0 0
      %2124 = vmatpush1.bf16.msra.mxu0 0
      %2125 = vmatprep.subr.bf16.mxu0 0
      %2126 = vmatpush1.bf16.msra.mxu0 0
      %2127 = vmatprep.subr.bf16.mxu0 0
      %2128 = vmatpush1.bf16.msra.mxu0 0
      %2129 = vmatprep.subr.bf16.mxu0 0
      %2130 = vmatpush1.bf16.msra.mxu0 0
      %2131 = vmatprep.subr.bf16.mxu0 0
      %2132 = vmatpush1.bf16.msra.mxu0 0
      %2133 = vmatprep.subr.bf16.mxu0 0
      %2134 = vmatpush1.bf16.msra.mxu0 0
      %2135 = vmatprep.subr.bf16.mxu0 0
      %2136 = vmatpush1.bf16.msra.mxu0 0
      %2137 = vmatprep.subr.bf16.mxu0 0
      %2138 = vmatpush1.bf16.msra.mxu0 0
      %2139 = vmatprep.subr.bf16.mxu0 0
      %2140 = vmatpush1.bf16.msra.mxu0 0
      %2141 = vmatprep.mubr.bf16.mxu0 0
      %2142 = vmatmul.mubr.bf16.gmra.mrb[0].mxu0 %v2057
      %v2143 = vpop.f32.mrb[0].mxu0
      %v2144 = vadd.f32 0.0, %v2143
      %v2145 = vpop.f32.mrb[0].mxu0
      %v2146 = vpop.f32.mrb[0].mxu0
      %v2147 = vpop.f32.mrb[0].mxu0
      %2148 = vdwg.mxu0
      %v2149 = vadd.f32 %v2029, %v2103
      %v2150 = vadd.f32 %v2030, %v2105
      %v2151 = vadd.f32 %v2031, %v2144
      %v2152 = vld [vmem:[%s3 + $0x18] sm:$0xf]
      %2153 = vrot.lane.b32.xlu0 %v2041, 105
      %v2154 = vpop.permute.xlu0 %2153
      %2155 = vrot.lane.b32.xlu0 %v2042, 105
      %v2156 = vpop.permute.xlu0 %2155
      %2157 = vrot.lane.b32.xlu0 %v2043, 105
      %v2158 = vpop.permute.xlu0 %2157
      %2159 = vrot.lane.b32.xlu0 %v2044, 105
      %v2160 = vpop.permute.xlu0 %2159
      %vm2161 = vcmask 859136
      %v2162 = vsel %vm2161, %v2154, %v2156
      %v2163 = vsel %vm2161, %v2156, %v2158
      %v2164 = vsel %vm2161, %v2158, %v2160
      %v2166 = vsel %vm1507, %v2152, 0
      %v2169 = vsel %vm1511, %v2162, 0
      %v2172 = vsel %vm1511, %v2163, 0
      %v2175 = vsel %vm1511, %v2164, 0
      %2177 = vmatprep.subr.bf16.mxu0 %v2172
      %2178 = vmatpush1.bf16.msra.mxu0 %v2169
      %2179 = vmatprep.subr.bf16.mxu0 0
      %2180 = vmatpush1.bf16.msra.mxu0 0
      %2181 = vmatprep.subr.bf16.mxu0 0
      %2182 = vmatpush1.bf16.msra.mxu0 0
      %2183 = vmatprep.subr.bf16.mxu0 0
      %2184 = vmatpush1.bf16.msra.mxu0 0
      %2185 = vmatprep.subr.bf16.mxu0 0
      %2186 = vmatpush1.bf16.msra.mxu0 0
      %2187 = vmatprep.subr.bf16.mxu0 0
      %2188 = vmatpush1.bf16.msra.mxu0 0
      %2189 = vmatprep.subr.bf16.mxu0 0
      %2190 = vmatpush1.bf16.msra.mxu0 0
      %2191 = vmatprep.subr.bf16.mxu0 0
      %2192 = vmatpush1.bf16.msra.mxu0 0
      %2193 = vmatprep.subr.bf16.mxu0 0
      %2194 = vmatpush1.bf16.msra.mxu0 0
      %2195 = vmatprep.subr.bf16.mxu0 0
      %2196 = vmatpush1.bf16.msra.mxu0 0
      %2197 = vmatprep.subr.bf16.mxu0 0
      %2198 = vmatpush1.bf16.msra.mxu0 0
      %2199 = vmatprep.subr.bf16.mxu0 0
      %2200 = vmatpush1.bf16.msra.mxu0 0
      %2201 = vmatprep.subr.bf16.mxu0 0
      %2202 = vmatpush1.bf16.msra.mxu0 0
      %2203 = vmatprep.subr.bf16.mxu0 0
      %2204 = vmatpush1.bf16.msra.mxu0 0
      %2205 = vmatprep.subr.bf16.mxu0 0
      %2206 = vmatpush1.bf16.msra.mxu0 0
      %2207 = vmatprep.subr.bf16.mxu0 0
      %2208 = vmatpush1.bf16.msra.mxu0 0
      %2209 = vmatprep.mubr.bf16.mxu0 0
      %2210 = vmatmul.mubr.bf16.gmra.mrb[0].mxu0 %v2166
      %v2211 = vpop.f32.mrb[0].mxu0
      %v2212 = vadd.f32 0.0, %v2211
      %v2213 = vpop.f32.mrb[0].mxu0
      %v2214 = vadd.f32 0.0, %v2213
      %v2215 = vpop.f32.mrb[0].mxu0
      %v2216 = vpop.f32.mrb[0].mxu0
      %2217 = vdwg.mxu0
      %2218 = vmatprep.subr.bf16.mxu0 0
      %2219 = vmatpush1.bf16.msra.mxu0 %v2175
      %2220 = vmatprep.subr.bf16.mxu0 0
      %2221 = vmatpush1.bf16.msra.mxu0 0
      %2222 = vmatprep.subr.bf16.mxu0 0
      %2223 = vmatpush1.bf16.msra.mxu0 0
      %2224 = vmatprep.subr.bf16.mxu0 0
      %2225 = vmatpush1.bf16.msra.mxu0 0
      %2226 = vmatprep.subr.bf16.mxu0 0
      %2227 = vmatpush1.bf16.msra.mxu0 0
      %2228 = vmatprep.subr.bf16.mxu0 0
      %2229 = vmatpush1.bf16.msra.mxu0 0
      %2230 = vmatprep.subr.bf16.mxu0 0
      %2231 = vmatpush1.bf16.msra.mxu0 0
      %2232 = vmatprep.subr.bf16.mxu0 0
      %2233 = vmatpush1.bf16.msra.mxu0 0
      %2234 = vmatprep.subr.bf16.mxu0 0
      %2235 = vmatpush1.bf16.msra.mxu0 0
      %2236 = vmatprep.subr.bf16.mxu0 0
      %2237 = vmatpush1.bf16.msra.mxu0 0
      %2238 = vmatprep.subr.bf16.mxu0 0
      %2239 = vmatpush1.bf16.msra.mxu0 0
      %2240 = vmatprep.subr.bf16.mxu0 0
      %2241 = vmatpush1.bf16.msra.mxu0 0
      %2242 = vmatprep.subr.bf16.mxu0 0
      %2243 = vmatpush1.bf16.msra.mxu0 0
      %2244 = vmatprep.subr.bf16.mxu0 0
      %2245 = vmatpush1.bf16.msra.mxu0 0
      %2246 = vmatprep.subr.bf16.mxu0 0
      %2247 = vmatpush1.bf16.msra.mxu0 0
      %2248 = vmatprep.subr.bf16.mxu0 0
      %2249 = vmatpush1.bf16.msra.mxu0 0
      %2250 = vmatprep.mubr.bf16.mxu0 0
      %2251 = vmatmul.mubr.bf16.gmra.mrb[0].mxu0 %v2166
      %v2252 = vpop.f32.mrb[0].mxu0
      %v2253 = vadd.f32 0.0, %v2252
      %v2254 = vpop.f32.mrb[0].mxu0
      %v2255 = vpop.f32.mrb[0].mxu0
      %v2256 = vpop.f32.mrb[0].mxu0
      %2257 = vdwg.mxu0
      %v2258 = vadd.f32 %v2149, %v2212
      %v2259 = vadd.f32 %v2150, %v2214
      %v2260 = vadd.f32 %v2151, %v2253
      %v2261 = vld [vmem:[%s3 + $0x1c] sm:$0xf]
      %2262 = vrot.lane.b32.xlu0 %v2041, 104
      %v2263 = vpop.permute.xlu0 %2262
      %2264 = vrot.lane.b32.xlu0 %v2042, 104
      %v2265 = vpop.permute.xlu0 %2264
      %2266 = vrot.lane.b32.xlu0 %v2043, 104
      %v2267 = vpop.permute.xlu0 %2266
      %2268 = vrot.lane.b32.xlu0 %v2044, 104
      %v2269 = vpop.permute.xlu0 %2268
      %v2270 = vsel %vm652, %v2263, %v2265
      %v2271 = vsel %vm652, %v2265, %v2267
      %v2272 = vsel %vm652, %v2267, %v2269
      %v2274 = vsel %vm1507, %v2261, 0
      %v2277 = vsel %vm1511, %v2270, 0
      %v2280 = vsel %vm1511, %v2271, 0
      %v2283 = vsel %vm1511, %v2272, 0
      %2285 = vmatprep.subr.bf16.mxu0 %v2280
      %2286 = vmatpush1.bf16.msra.mxu0 %v2277
      %2287 = vmatprep.subr.bf16.mxu0 0
      %2288 = vmatpush1.bf16.msra.mxu0 0
      %2289 = vmatprep.subr.bf16.mxu0 0
      %2290 = vmatpush1.bf16.msra.mxu0 0
      %2291 = vmatprep.subr.bf16.mxu0 0
      %2292 = vmatpush1.bf16.msra.mxu0 0
      %2293 = vmatprep.subr.bf16.mxu0 0
      %2294 = vmatpush1.bf16.msra.mxu0 0
      %2295 = vmatprep.subr.bf16.mxu0 0
      %2296 = vmatpush1.bf16.msra.mxu0 0
      %2297 = vmatprep.subr.bf16.mxu0 0
      %2298 = vmatpush1.bf16.msra.mxu0 0
      %2299 = vmatprep.subr.bf16.mxu0 0
      %2300 = vmatpush1.bf16.msra.mxu0 0
      %2301 = vmatprep.subr.bf16.mxu0 0
      %2302 = vmatpush1.bf16.msra.mxu0 0
      %2303 = vmatprep.subr.bf16.mxu0 0
      %2304 = vmatpush1.bf16.msra.mxu0 0
      %2305 = vmatprep.subr.bf16.mxu0 0
      %2306 = vmatpush1.bf16.msra.mxu0 0
      %2307 = vmatprep.subr.bf16.mxu0 0
      %2308 = vmatpush1.bf16.msra.mxu0 0
      %2309 = vmatprep.subr.bf16.mxu0 0
      %2310 = vmatpush1.bf16.msra.mxu0 0
      %2311 = vmatprep.subr.bf16.mxu0 0
      %2312 = vmatpush1.bf16.msra.mxu0 0
      %2313 = vmatprep.subr.bf16.mxu0 0
      %2314 = vmatpush1.bf16.msra.mxu0 0
      %2315 = vmatprep.subr.bf16.mxu0 0
      %2316 = vmatpush1.bf16.msra.mxu0 0
      %2317 = vmatprep.mubr.bf16.mxu0 0
      %2318 = vmatmul.mubr.bf16.gmra.mrb[0].mxu0 %v2274
      %v2319 = vpop.f32.mrb[0].mxu0
      %v2320 = vadd.f32 0.0, %v2319
      %v2321 = vpop.f32.mrb[0].mxu0
      %v2322 = vadd.f32 0.0, %v2321
      %v2323 = vpop.f32.mrb[0].mxu0
      %v2324 = vpop.f32.mrb[0].mxu0
      %2325 = vdwg.mxu0
      %2326 = vmatprep.subr.bf16.mxu0 0
      %2327 = vmatpush1.bf16.msra.mxu0 %v2283
      %2328 = vmatprep.subr.bf16.mxu0 0
      %2329 = vmatpush1.bf16.msra.mxu0 0
      %2330 = vmatprep.subr.bf16.mxu0 0
      %2331 = vmatpush1.bf16.msra.mxu0 0
      %2332 = vmatprep.subr.bf16.mxu0 0
      %2333 = vmatpush1.bf16.msra.mxu0 0
      %2334 = vmatprep.subr.bf16.mxu0 0
      %2335 = vmatpush1.bf16.msra.mxu0 0
      %2336 = vmatprep.subr.bf16.mxu0 0
      %2337 = vmatpush1.bf16.msra.mxu0 0
      %2338 = vmatprep.subr.bf16.mxu0 0
      %2339 = vmatpush1.bf16.msra.mxu0 0
      %2340 = vmatprep.subr.bf16.mxu0 0
      %2341 = vmatpush1.bf16.msra.mxu0 0
      %2342 = vmatprep.subr.bf16.mxu0 0
      %2343 = vmatpush1.bf16.msra.mxu0 0
      %2344 = vmatprep.subr.bf16.mxu0 0
      %2345 = vmatpush1.bf16.msra.mxu0 0
      %2346 = vmatprep.subr.bf16.mxu0 0
      %2347 = vmatpush1.bf16.msra.mxu0 0
      %2348 = vmatprep.subr.bf16.mxu0 0
      %2349 = vmatpush1.bf16.msra.mxu0 0
      %2350 = vmatprep.subr.bf16.mxu0 0
      %2351 = vmatpush1.bf16.msra.mxu0 0
      %2352 = vmatprep.subr.bf16.mxu0 0
      %2353 = vmatpush1.bf16.msra.mxu0 0
      %2354 = vmatprep.subr.bf16.mxu0 0
      %2355 = vmatpush1.bf16.msra.mxu0 0
      %2356 = vmatprep.subr.bf16.mxu0 0
      %2357 = vmatpush1.bf16.msra.mxu0 0
      %2358 = vmatprep.mubr.bf16.mxu0 0
      %2359 = vmatmul.mubr.bf16.gmra.mrb[0].mxu0 %v2274
      %v2360 = vpop.f32.mrb[0].mxu0
      %v2361 = vadd.f32 0.0, %v2360
      %v2362 = vpop.f32.mrb[0].mxu0
      %v2363 = vpop.f32.mrb[0].mxu0
      %v2364 = vpop.f32.mrb[0].mxu0
      %2365 = vdwg.mxu0
      %v2366 = vadd.f32 %v2258, %v2320
      %v2367 = vadd.f32 %v2259, %v2322
      %v2368 = vadd.f32 %v2260, %v2361
      %v2369 = vld [vmem:[%s3 + $0x20] sm:$0xf]
      %2370 = vrot.lane.b32.xlu0 %v2041, 103
      %v2371 = vpop.permute.xlu0 %2370
      %2372 = vrot.lane.b32.xlu0 %v2042, 103
      %v2373 = vpop.permute.xlu0 %2372
      %2374 = vrot.lane.b32.xlu0 %v2043, 103
      %v2375 = vpop.permute.xlu0 %2374
      %2376 = vrot.lane.b32.xlu0 %v2044, 103
      %v2377 = vpop.permute.xlu0 %2376
      %v2378 = vsel %vm780, %v2371, %v2373
      %v2379 = vsel %vm780, %v2373, %v2375
      %v2380 = vsel %vm780, %v2375, %v2377
      %v2382 = vsel %vm1507, %v2369, 0
      %v2385 = vsel %vm1511, %v2378, 0
      %v2388 = vsel %vm1511, %v2379, 0
      %v2391 = vsel %vm1511, %v2380, 0
      %2393 = vmatprep.subr.bf16.mxu0 %v2388
      %2394 = vmatpush1.bf16.msra.mxu0 %v2385
      %2395 = vmatprep.subr.bf16.mxu0 0
      %2396 = vmatpush1.bf16.msra.mxu0 0
      %2397 = vmatprep.subr.bf16.mxu0 0
      %2398 = vmatpush1.bf16.msra.mxu0 0
      %2399 = vmatprep.subr.bf16.mxu0 0
      %2400 = vmatpush1.bf16.msra.mxu0 0
      %2401 = vmatprep.subr.bf16.mxu0 0
      %2402 = vmatpush1.bf16.msra.mxu0 0
      %2403 = vmatprep.subr.bf16.mxu0 0
      %2404 = vmatpush1.bf16.msra.mxu0 0
      %2405 = vmatprep.subr.bf16.mxu0 0
      %2406 = vmatpush1.bf16.msra.mxu0 0
      %2407 = vmatprep.subr.bf16.mxu0 0
      %2408 = vmatpush1.bf16.msra.mxu0 0
      %2409 = vmatprep.subr.bf16.mxu0 0
      %2410 = vmatpush1.bf16.msra.mxu0 0
      %2411 = vmatprep.subr.bf16.mxu0 0
      %2412 = vmatpush1.bf16.msra.mxu0 0
      %2413 = vmatprep.subr.bf16.mxu0 0
      %2414 = vmatpush1.bf16.msra.mxu0 0
      %2415 = vmatprep.subr.bf16.mxu0 0
      %2416 = vmatpush1.bf16.msra.mxu0 0
      %2417 = vmatprep.subr.bf16.mxu0 0
      %2418 = vmatpush1.bf16.msra.mxu0 0
      %2419 = vmatprep.subr.bf16.mxu0 0
      %2420 = vmatpush1.bf16.msra.mxu0 0
      %2421 = vmatprep.subr.bf16.mxu0 0
      %2422 = vmatpush1.bf16.msra.mxu0 0
      %2423 = vmatprep.subr.bf16.mxu0 0
      %2424 = vmatpush1.bf16.msra.mxu0 0
      %2425 = vmatprep.mubr.bf16.mxu0 0
      %2426 = vmatmul.mubr.bf16.gmra.mrb[0].mxu0 %v2382
      %v2427 = vpop.f32.mrb[0].mxu0
      %v2428 = vadd.f32 0.0, %v2427
      %v2429 = vpop.f32.mrb[0].mxu0
      %v2430 = vadd.f32 0.0, %v2429
      %v2431 = vpop.f32.mrb[0].mxu0
      %v2432 = vpop.f32.mrb[0].mxu0
      %2433 = vdwg.mxu0
      %2434 = vmatprep.subr.bf16.mxu0 0
      %2435 = vmatpush1.bf16.msra.mxu0 %v2391
      %2436 = vmatprep.subr.bf16.mxu0 0
      %2437 = vmatpush1.bf16.msra.mxu0 0
      %2438 = vmatprep.subr.bf16.mxu0 0
      %2439 = vmatpush1.bf16.msra.mxu0 0
      %2440 = vmatprep.subr.bf16.mxu0 0
      %2441 = vmatpush1.bf16.msra.mxu0 0
      %2442 = vmatprep.subr.bf16.mxu0 0
      %2443 = vmatpush1.bf16.msra.mxu0 0
      %2444 = vmatprep.subr.bf16.mxu0 0
      %2445 = vmatpush1.bf16.msra.mxu0 0
      %2446 = vmatprep.subr.bf16.mxu0 0
      %2447 = vmatpush1.bf16.msra.mxu0 0
      %2448 = vmatprep.subr.bf16.mxu0 0
      %2449 = vmatpush1.bf16.msra.mxu0 0
      %2450 = vmatprep.subr.bf16.mxu0 0
      %2451 = vmatpush1.bf16.msra.mxu0 0
      %2452 = vmatprep.subr.bf16.mxu0 0
      %2453 = vmatpush1.bf16.msra.mxu0 0
      %2454 = vmatprep.subr.bf16.mxu0 0
      %2455 = vmatpush1.bf16.msra.mxu0 0
      %2456 = vmatprep.subr.bf16.mxu0 0
      %2457 = vmatpush1.bf16.msra.mxu0 0
      %2458 = vmatprep.subr.bf16.mxu0 0
      %2459 = vmatpush1.bf16.msra.mxu0 0
      %2460 = vmatprep.subr.bf16.mxu0 0
      %2461 = vmatpush1.bf16.msra.mxu0 0
      %2462 = vmatprep.subr.bf16.mxu0 0
      %2463 = vmatpush1.bf16.msra.mxu0 0
      %2464 = vmatprep.subr.bf16.mxu0 0
      %2465 = vmatpush1.bf16.msra.mxu0 0
      %2466 = vmatprep.mubr.bf16.mxu0 0
      %2467 = vmatmul.mubr.bf16.gmra.mrb[0].mxu0 %v2382
      %v2468 = vpop.f32.mrb[0].mxu0
      %v2469 = vadd.f32 0.0, %v2468
      %v2470 = vpop.f32.mrb[0].mxu0
      %v2471 = vpop.f32.mrb[0].mxu0
      %v2472 = vpop.f32.mrb[0].mxu0
      %2473 = vdwg.mxu0
      %v2474 = vadd.f32 %v2366, %v2428
      %v2475 = vadd.f32 %v2367, %v2430
      %v2476 = vadd.f32 %v2368, %v2469
      %v2477 = vld [vmem:[%s4] sm:$0xff]
      %2479 = vset.pattern.permute.xlu0 0
      %2480 = vperm.xlu0 %2479, %v2477
      %v2481 = vpop.permute.xlu0 %2480
      %v2483 = vadd.f32 %v2474, %v2481
      %v2484 = vadd.f32 %v2475, %v2481
      %v2485 = vadd.f32 %v2476, %v2481
      %v2486 = vmul.f32 %v2483, %v1405
      %v2487 = vmul.f32 %v2484, %v1409
      %v2488 = vmul.f32 %v2485, %v1413
      %v2489 = vadd.f32 %v2486, %v2487
      %v2490 = vadd.f32 %v2489, %v2488
      %2491 = vadd.xlane.f32.xlu0 %v2490
      %v2492 = vpop.xlane.xlu0 %2491
      %v2493 = vmul.f32 %v2492, 0.00390625
      %v2494 = vsub.f32 %v2483, %v2493
      %v2495 = vsub.f32 %v2484, %v2493
      %v2496 = vsub.f32 %v2485, %v2493
      %v2497 = vmul.f32 %v2494, %v1405
      %v2498 = vmul.f32 %v2495, %v1409
      %v2499 = vmul.f32 %v2496, %v1413
      %v2500 = vmul.f32 %v2497, %v2497
      %v2501 = vmul.f32 %v2498, %v2498
      %v2502 = vmul.f32 %v2499, %v2499
      %v2503 = vadd.f32 %v2500, %v2501
      %v2504 = vadd.f32 %v2503, %v2502
      %2505 = vadd.xlane.f32.xlu0 %v2504
      %v2506 = vpop.xlane.xlu0 %2505
      %v2507 = vmul.f32 %v2506, 0.00390625
      %v2508 = vadd.f32 %v2507, 1e-05
      %v2509 = vrsqrt.pop %v2508
      %v2510 = vmul.f32 %v2477, %v2509
      %2512 = vset.pattern.permute.xlu0 1
      %2513 = vperm.xlu0 %2512, %v2510
      %v2514 = vpop.permute.xlu0 %2513
      %v2516 = vmul.f32 %v2494, %v2514
      %v2517 = vmul.f32 %v2495, %v2514
      %v2518 = vmul.f32 %v2496, %v2514
      %2519 = vset.pattern.permute.xlu0 2
      %2520 = vperm.xlu0 %2519, %v2477
      %v2521 = vpop.permute.xlu0 %2520
      %v2523 = vadd.f32 %v2516, %v2521
      %v2524 = vadd.f32 %v2517, %v2521
      %v2525 = vadd.f32 %v2518, %v2521
      %v2526 = vmul.f32 %v2523, 0.01
      %v2527 = vmul.f32 %v2524, 0.01
      %v2528 = vmul.f32 %v2525, 0.01
      %v2529 = vmax.f32 %v2523, %v2526
      %v2530 = vmax.f32 %v2524, %v2527
      %v2531 = vmax.f32 %v2525, %v2528
      %v2532 = vpack.c.bf16 %v2529, %v2529
      %v2533 = vpack.c.bf16 %v2530, %v2530
      %v2534 = vpack.c.bf16 %v2531, %v2531
      %v2538 = vunpack.c.l.b16 %v2532
      %v2539 = vunpack.c.l.b16 %v2533
      %v2540 = vunpack.c.l.b16 %v2534
      %v2541 = vpack.c.b16 %v2539, %v2538
      %v2542 = vpack.c.b16 %v2540, %v2540
      %2545 = vst [vmem:[%s251] sm:$0xff] %v2541
      %2546 = vst [vmem:[%s251 + $0x8] sm:$0xf] %v2542
      %p2547 = scmp.lt.s32.totalorder %s17, 1
      %s2548 = scalar_select %p2547, %s17, 1
      %s2549 = smul.addr %s2548, 3
      %s2550 = smul.addr %s2549, 4
      %s2551 = scalar_lea.vmem %s6, %s2550
      // Predicated region
      $region45: #{stage_forward.1} parent=43 // pred_check
        %p2552 = pneg %p166
      $region46: #{stage_forward.1} parent=43 // pred_check_branch
        %2554 = sbr.rel (%p2552) target = $region48
      $region47: #{stage_forward.1} parent=43 // pred_region
        _
      $region48: #{stage_forward.1} parent=43 // pred_fallthru
        _
    $region44: #{stage_forward.1} parent=5 // pred_fallthru
      _
    %p2555 = scmp.le.s32.totalorder 2, %s12
    // Predicated region
    $region49: #{stage_forward.1} parent=5 // pred_check
      %p2556 = pneg %p2555
    $region50: #{stage_forward.1} parent=5 // pred_check_branch
      %2558 = sbr.rel (%p2556) target = $region52
    $region51: #{stage_forward.1} parent=5 // pred_region
      %s2559 = ssub.s32 %s12, 2
      // Predicated region
      $region53: #{stage_forward.1} parent=51 // pred_check
        %p2560 = pneg %p172
      $region54: #{stage_forward.1} parent=51 // pred_check_branch
        %2562 = sbr.rel (%p2560) target = $region56
      $region55: #{stage_forward.1} parent=51 // pred_region
        %p2563 = scmp.lt.s32.totalorder %s18, 1
        %s2564 = scalar_select %p2563, %s18, 1
        %s2565 = smul.addr %s2564, 3
        %s2566 = smul.addr %s2565, 4
        %s2567 = scalar_lea.vmem %s6, %s2566
      $region56: #{stage_forward.1} parent=51 // pred_fallthru
        _
    $region52: #{stage_forward.1} parent=5 // pred_fallthru
      _
  $region6: #{stage_forward.1} parent=0 // loop_footer
    %s16 = sadd.s32 1, %s12
  $region7: #{stage_forward.1} parent=0 // loop_footer_branch
    %11 = sbr.rel target = $region3
  $region8: #{stage_forward.1} parent=0 // loop_exit
    _

</llo_original>
